<compile_context>
chip_gen: v5e
topology: v5e:2x2
jax: 0.10.0
libtpu: 0.0.40
codegen_flags: <defaults>
</compile_context>

<pallas_src>
import functools

import jax
import jax.numpy as jnp
from jax.experimental import pallas as pl
from jax.experimental.pallas import tpu as pltpu


def _round_up(v, m):
    return (v + m - 1) // m * m


# ----------------------------------------------------------------------------
# Pallas kernel: VMEM im2col + single conv GEMM + bias/ReLU/pool + FC per step
# ----------------------------------------------------------------------------
def _embryo_kernel(x_ref, w_ref, tconv_ref, pool_ref, fcw_ref, tfc_ref,
                   out_ref, col_ref, *, K, WP, HWp, TB, Cin_pad):
    # x_ref    : [TB, Cin_pad, HPWPp]   zero/channel-padded NCHW-flat input (gemm dtype)
    # w_ref    : [Cout8, K*K*Cin_pad]   normalization-folded conv weights (resident)
    # tconv_ref: [1, Cout8, TB]         per-sample conv time bias (f32)
    # pool_ref : [1, HWp]               (1/P)-scaled validity mask (f32, resident)
    # fcw_ref  : [Cout8, Fp]            FC weights, lane-padded (f32, resident)
    # tfc_ref  : [1, TB, Fp]            per-sample FC time bias (f32)
    # out_ref  : [1, TB, Fp]
    # col_ref  : [K*K*Cin_pad, TB*HWp]  VMEM im2col scratch (gemm dtype)

    # ---- assemble the im2col tile (every row / lane is rewritten each step) ----
    for b in range(TB):
        for ki in range(K):
            for kj in range(K):
                tap = ki * K + kj
                s = ki * WP + kj                      # static flat shift of this tap
                col_ref[tap * Cin_pad:(tap + 1) * Cin_pad,
                        b * HWp:(b + 1) * HWp] = x_ref[b, :, s:s + HWp]

    # ---- one fused conv GEMM on the MXU (contraction = K*K*Cin_pad) ------------
    feat = jnp.dot(w_ref[...], col_ref[...],
                   preferred_element_type=jnp.float32)        # [Cout8, TB*HWp] f32

    # ---- per-sample epilogue on the small transposed feat (~2 vregs / sample) --
    pool = pool_ref[...]                                      # [1, HWp]
    pooled_cols = []
    for b in range(TB):
        seg = feat[:, b * HWp:(b + 1) * HWp]                  # [Cout8, HWp]
        act = jnp.maximum(seg + tconv_ref[0, :, b:b + 1], 0.0)
        pooled_cols.append(jnp.sum(act * pool, axis=-1, keepdims=True))
    pooled_t = jnp.concatenate(pooled_cols, axis=-1)          # [Cout8, TB]

    # ---- FC head + time bias; lane-dense [TB, Fp] store -------------------------
    out = jnp.dot(pooled_t.T, fcw_ref[...],
                  preferred_element_type=jnp.float32) + tfc_ref[0]
    out_ref[0] = out.astype(out_ref.dtype)


# ----------------------------------------------------------------------------
# Wrapper: normalization folding, padding / layout prep, pallas_call
# ----------------------------------------------------------------------------
def model_wrapper_forward(x, t_for_conv, t_for_fc, params,
                          transpose=True, mean_std=True,
                          gemm_dtype=jnp.bfloat16, tb=4):
    """Pallas implementation of ModelWrapper.forward.

    x          : NHWC [B, H, W, C] when transpose=True (mirrors the PyTorch
                 wrapper's permute), NCHW [B, C, H, W] when transpose=False.
    t_for_conv : [B, Cout] ; t_for_fc : [B, F]
    gemm_dtype : conv-GEMM input dtype (bf16 default on all generations, including
                 v5e whose MXU is bf16-native; accumulation / epilogue stay f32).
    tb         : samples per grid step (capped so the grid keeps >= 2 steps).
    """
    if transpose:
        x = jnp.transpose(x, (0, 3, 1, 2))                    # NHWC -> NCHW
    x = x.astype(jnp.float32)
    B, Cin, H, W = x.shape

    conv_w_pt, fc_w = params["conv_w"], params["fc_w"]
    Cout, Cin_w, K, _ = conv_w_pt.shape
    assert Cin_w == Cin
    F = fc_w.shape[1]
    OH, OW = H - K + 1, W - K + 1
    P = OH * OW

    # ---- fold normalization into the linear conv ------------------------------
    #   (x/255 - 0.5) . W = (x * 1/256) . (W * 256/255) - 0.5 * sum(W)
    # 1/256 is exponent-only (exact in bf16/f32), so bf16 GEMM inputs keep full
    # mantissa precision; the -0.5 shift lands in the per-sample conv bias.
    w = jnp.transpose(conv_w_pt, (0, 2, 3, 1)).astype(jnp.float32)   # [Cout,K,K,Cin]
    t_conv_eff = t_for_conv.astype(jnp.float32)
    if mean_std:
        t_conv_eff = t_conv_eff - 0.5 * jnp.sum(w, axis=(1, 2, 3))   # [B, Cout]
        w = w * (256.0 / 255.0)
        x = x * (1.0 / 256.0)

    # ---- padded sizes ----------------------------------------------------------
    Cout8 = _round_up(Cout, 8)        # sublane pad only (no 128-lane feat blow-up)
    Cin_pad = _round_up(Cin, 8)       # aligned im2col rows, rewritten every step
    KKC = K * K * Cin_pad
    Fp = _round_up(F, 128)            # lane-dense FC weights / output tile
    HP, WP = H + K - 1, W + K - 1
    q_max = (OH - 1) * WP + (OW - 1)
    HWp = _round_up(q_max + 1, 128)   # lane-dense flat conv-output extent
    s_max = (K - 1) * WP + (K - 1)
    HPWPp = _round_up(max(HP * WP, HWp + s_max), 128)   # keep tap slices in-bounds

    # ---- batch tiling: tb samples per grid step, >= 2 steps when possible ------
    tb = max(1, min(tb, B))
    if B >= 2:
        tb = min(tb, (B + 1) // 2)    # v7x: keep both TensorCores busy
    nsteps = pl.cdiv(B, tb)
    Bp = nsteps * tb

    # ---- weights (resident across the grid) -----------------------------------
    w_g = jnp.zeros((Cout8, K, K, Cin_pad), jnp.float32)
    w_g = w_g.at[:Cout, :, :, :Cin].set(w).reshape(Cout8, KKC).astype(gemm_dtype)
    fc_w_p = jnp.zeros((Cout8, Fp), jnp.float32).at[:Cout, :F].set(
        fc_w.astype(jnp.float32))

    # ---- activations: zero-padded, channel-padded, flattened NCHW -------------
    x_pad = jnp.pad(x, ((0, 0), (0, 0), (0, K - 1), (0, K - 1)))     # [B,Cin,HP,WP]
    x_flat = x_pad.reshape(B, Cin, HP * WP)
    x_flat = jnp.pad(x_flat, ((0, Bp - B), (0, Cin_pad - Cin),
                              (0, HPWPp - HP * WP))).astype(gemm_dtype)

    # ---- per-sample time conditioning, laid out per grid step ------------------
    t_conv_p = jnp.zeros((Bp, Cout8), jnp.float32).at[:B, :Cout].set(t_conv_eff)
    t_conv_steps = t_conv_p.reshape(nsteps, tb, Cout8).transpose(0, 2, 1)
    t_fc_p = jnp.zeros((Bp, Fp), jnp.float32).at[:B, :F].set(
        t_for_fc.astype(jnp.float32))
    t_fc_steps = t_fc_p.reshape(nsteps, tb, Fp)

    # ---- masked mean-pool row: kills padded / row-wrap positions, 1/P scaling --
    q = jnp.arange(HWp)
    valid = ((q // WP) < OH) & ((q % WP) < OW)
    pool_row = (valid.astype(jnp.float32) / float(P)).reshape(1, HWp)

    kernel = functools.partial(_embryo_kernel, K=K, WP=WP, HWp=HWp, TB=tb,
                               Cin_pad=Cin_pad)

    out = pl.pallas_call(
        kernel,
        out_shape=jax.ShapeDtypeStruct((nsteps, tb, Fp), jnp.float32),
        grid=(nsteps,),
        in_specs=[
            pl.BlockSpec((tb, Cin_pad, HPWPp), lambda i: (i, 0, 0)),  # activations
            pl.BlockSpec((Cout8, KKC), lambda i: (0, 0)),             # conv W (resident)
            pl.BlockSpec((1, Cout8, tb), lambda i: (i, 0, 0)),        # conv time bias
            pl.BlockSpec((1, HWp), lambda i: (0, 0)),                 # pool mask (resident)
            pl.BlockSpec((Cout8, Fp), lambda i: (0, 0)),              # fc W (resident)
            pl.BlockSpec((1, tb, Fp), lambda i: (i, 0, 0)),           # fc time bias
        ],
        out_specs=pl.BlockSpec((1, tb, Fp), lambda i: (i, 0, 0)),
        scratch_shapes=[pltpu.VMEM((KKC, tb * HWp), gemm_dtype)],     # im2col tile
        compiler_params=pltpu.CompilerParams(
            dimension_semantics=("parallel",)),   # v7x: split grid steps across TCs
    )(x_flat, w_g, t_conv_steps, pool_row, fc_w_p, t_fc_steps)

    return out.reshape(Bp, Fp)[:B, :F]


# ----------------------------------------------------------------------------
# Pure-JAX reference (mirrors the PyTorch semantics) for the sanity check
# ----------------------------------------------------------------------------
def _reference_forward(x, t_for_conv, t_for_fc, params,
                       transpose=True, mean_std=True):
    if not transpose:
        x = jnp.transpose(x, (0, 2, 3, 1))                    # NCHW -> NHWC
    xn = x / 255.0 - 0.5 if mean_std else x
    conv_w_pt, fc_w = params["conv_w"], params["fc_w"]
    Cout, Cin, K, _ = conv_w_pt.shape
    B, H, W, _ = x.shape
    OH, OW = H - K + 1, W - K + 1
    w = jnp.transpose(conv_w_pt, (2, 3, 1, 0))                # [K, K, Cin, Cout]
    feat = jnp.zeros((B, OH, OW, Cout), jnp.float32)
    for ki in range(K):
        for kj in range(K):
            feat = feat + jnp.einsum("bhwc,co->bhwo",
                                     xn[:, ki:ki + OH, kj:kj + OW, :], w[ki, kj])
    feat = jnp.maximum(feat + t_for_conv[:, None, None, :], 0.0)
    pooled = feat.mean(axis=(1, 2))
    return pooled @ fc_w + t_for_fc


if __name__ == "__main__":
    B, H, W, Cin = 8, 16, 16, 4
    Cout, K, F = 8, 3, 32

    key = jax.random.PRNGKey(0)
    kx, ktc, ktf, kw1, kw2 = jax.random.split(key, 5)

    # image-like NHWC input in [0, 255] (the wrapper divides by 255 and centers)
    x = jax.random.uniform(kx, (B, H, W, Cin), jnp.float32) * 255.0
    t_for_conv = jax.random.normal(ktc, (B, Cout), jnp.float32)
    t_for_fc = jax.random.normal(ktf, (B, F), jnp.float32)
    params = {
        "conv_w": 0.1 * jax.random.normal(kw1, (Cout, Cin, K, K), jnp.float32),
        "fc_w": 0.1 * jax.random.normal(kw2, (Cout, F), jnp.float32),
    }

    ref = _reference_forward(x, t_for_conv, t_for_fc, params,
                             transpose=True, mean_std=True)

    # f32 GEMM path (tight check against the reference)
    out_f32 = model_wrapper_forward(x, t_for_conv, t_for_fc, params,
                                    transpose=True, mean_std=True,
                                    gemm_dtype=jnp.float32, tb=4)
    out_f32 = jax.block_until_ready(out_f32)
    assert out_f32.shape == (B, F)
    assert jnp.allclose(out_f32, ref, atol=1e-3, rtol=1e-3), "f32 mismatch vs reference"

    # bf16 GEMM-input path (default: halves activation/weight DMA on every gen;
    # exact 1/256 activation prescale keeps the cast accurate)
    out_bf16 = model_wrapper_forward(x, t_for_conv, t_for_fc, params,
                                     transpose=True, mean_std=True,
                                     gemm_dtype=jnp.bfloat16, tb=4)
    out_bf16 = jax.block_until_ready(out_bf16)
    assert jnp.allclose(out_bf16, ref, atol=2e-2, rtol=2e-2), "bf16 mismatch vs reference"

    print("KERNEL_OK")
</pallas_src>

<mosaic_0001>
module attributes {stable_mosaic.version = 11 : i64} {
  func.func @_embryo_kernel(%arg0: i32, %arg1: memref<4x8x384xf32, #tpu.memory_space<vmem>>, %arg2: memref<8x72xf32, #tpu.memory_space<vmem>>, %arg3: memref<1x8x4xf32, #tpu.memory_space<vmem>>, %arg4: memref<1x256xf32, #tpu.memory_space<vmem>>, %arg5: memref<8x128xf32, #tpu.memory_space<vmem>>, %arg6: memref<1x4x128xf32, #tpu.memory_space<vmem>>, %arg7: memref<1x4x128xf32, #tpu.memory_space<vmem>>, %arg8: memref<72x1024xf32, #tpu.memory_space<vmem>>) attributes {dimension_semantics = [#tpu.dimension_semantics<parallel>], iteration_bounds = array<i64: 2>, scalar_prefetch = 0 : i64, scratch_operands = 1 : i64, tpu.core_type = #tpu.core_type<tc>, window_params = [{transform_indices = @transform_0, window_bounds = array<i64: 4, 8, 384>}, {pipeline_mode = #tpu.pipeline_mode<synchronous>, transform_indices = @transform_1, window_bounds = array<i64: 8, 72>}, {transform_indices = @transform_2, window_bounds = array<i64: 1, 8, 4>}, {pipeline_mode = #tpu.pipeline_mode<synchronous>, transform_indices = @transform_3, window_bounds = array<i64: 1, 256>}, {pipeline_mode = #tpu.pipeline_mode<synchronous>, transform_indices = @transform_4, window_bounds = array<i64: 8, 128>}, {transform_indices = @transform_5, window_bounds = array<i64: 1, 4, 128>}, {transform_indices = @transform_6, window_bounds = array<i64: 1, 4, 128>}]} {
    %c0 = arith.constant 0 : index
    %c0_0 = arith.constant 0 : index
    %c0_1 = arith.constant 0 : index
    %0 = vector.load %arg1[%c0, %c0_0, %c0_1] : memref<4x8x384xf32, #tpu.memory_space<vmem>>, vector<1x8x256xf32>
    %1 = vector.shape_cast %0 : vector<1x8x256xf32> to vector<8x256xf32>
    %c0_2 = arith.constant 0 : index
    %c0_3 = arith.constant 0 : index
    %2 = vector.load %arg8[%c0_2, %c0_3] : memref<72x1024xf32, #tpu.memory_space<vmem>>, vector<8x256xf32>
    tpu.vector_store %arg8[%c0_2, %c0_3], %1 {strides = array<i32>} : memref<72x1024xf32, #tpu.memory_space<vmem>>, vector<8x256xf32>,
    %c0_4 = arith.constant 0 : index
    %c0_5 = arith.constant 0 : index
    %c1 = arith.constant 1 : index
    %3 = vector.load %arg1[%c0_4, %c0_5, %c1] : memref<4x8x384xf32, #tpu.memory_space<vmem>>, vector<1x8x256xf32>
    %4 = vector.shape_cast %3 : vector<1x8x256xf32> to vector<8x256xf32>
    %c8 = arith.constant 8 : index
    %c0_6 = arith.constant 0 : index
    %5 = vector.load %arg8[%c8, %c0_6] : memref<72x1024xf32, #tpu.memory_space<vmem>>, vector<8x256xf32>
    tpu.vector_store %arg8[%c8, %c0_6], %4 {strides = array<i32>} : memref<72x1024xf32, #tpu.memory_space<vmem>>, vector<8x256xf32>,
    %c0_7 = arith.constant 0 : index
    %c0_8 = arith.constant 0 : index
    %c2 = arith.constant 2 : index
    %6 = vector.load %arg1[%c0_7, %c0_8, %c2] : memref<4x8x384xf32, #tpu.memory_space<vmem>>, vector<1x8x256xf32>
    %7 = vector.shape_cast %6 : vector<1x8x256xf32> to vector<8x256xf32>
    %c16 = arith.constant 16 : index
    %c0_9 = arith.constant 0 : index
    %8 = vector.load %arg8[%c16, %c0_9] : memref<72x1024xf32, #tpu.memory_space<vmem>>, vector<8x256xf32>
    tpu.vector_store %arg8[%c16, %c0_9], %7 {strides = array<i32>} : memref<72x1024xf32, #tpu.memory_space<vmem>>, vector<8x256xf32>,
    %c0_10 = arith.constant 0 : index
    %c0_11 = arith.constant 0 : index
    %c18 = arith.constant 18 : index
    %9 = vector.load %arg1[%c0_10, %c0_11, %c18] : memref<4x8x384xf32, #tpu.memory_space<vmem>>, vector<1x8x256xf32>
    %10 = vector.shape_cast %9 : vector<1x8x256xf32> to vector<8x256xf32>
    %c24 = arith.constant 24 : index
    %c0_12 = arith.constant 0 : index
    %11 = vector.load %arg8[%c24, %c0_12] : memref<72x1024xf32, #tpu.memory_space<vmem>>, vector<8x256xf32>
    tpu.vector_store %arg8[%c24, %c0_12], %10 {strides = array<i32>} : memref<72x1024xf32, #tpu.memory_space<vmem>>, vector<8x256xf32>,
    %c0_13 = arith.constant 0 : index
    %c0_14 = arith.constant 0 : index
    %c19 = arith.constant 19 : index
    %12 = vector.load %arg1[%c0_13, %c0_14, %c19] : memref<4x8x384xf32, #tpu.memory_space<vmem>>, vector<1x8x256xf32>
    %13 = vector.shape_cast %12 : vector<1x8x256xf32> to vector<8x256xf32>
    %c32 = arith.constant 32 : index
    %c0_15 = arith.constant 0 : index
    %14 = vector.load %arg8[%c32, %c0_15] : memref<72x1024xf32, #tpu.memory_space<vmem>>, vector<8x256xf32>
    tpu.vector_store %arg8[%c32, %c0_15], %13 {strides = array<i32>} : memref<72x1024xf32, #tpu.memory_space<vmem>>, vector<8x256xf32>,
    %c0_16 = arith.constant 0 : index
    %c0_17 = arith.constant 0 : index
    %c20 = arith.constant 20 : index
    %15 = vector.load %arg1[%c0_16, %c0_17, %c20] : memref<4x8x384xf32, #tpu.memory_space<vmem>>, vector<1x8x256xf32>
    %16 = vector.shape_cast %15 : vector<1x8x256xf32> to vector<8x256xf32>
    %c40 = arith.constant 40 : index
    %c0_18 = arith.constant 0 : index
    %17 = vector.load %arg8[%c40, %c0_18] : memref<72x1024xf32, #tpu.memory_space<vmem>>, vector<8x256xf32>
    tpu.vector_store %arg8[%c40, %c0_18], %16 {strides = array<i32>} : memref<72x1024xf32, #tpu.memory_space<vmem>>, vector<8x256xf32>,
    %c0_19 = arith.constant 0 : index
    %c0_20 = arith.constant 0 : index
    %c36 = arith.constant 36 : index
    %18 = vector.load %arg1[%c0_19, %c0_20, %c36] : memref<4x8x384xf32, #tpu.memory_space<vmem>>, vector<1x8x256xf32>
    %19 = vector.shape_cast %18 : vector<1x8x256xf32> to vector<8x256xf32>
    %c48 = arith.constant 48 : index
    %c0_21 = arith.constant 0 : index
    %20 = vector.load %arg8[%c48, %c0_21] : memref<72x1024xf32, #tpu.memory_space<vmem>>, vector<8x256xf32>
    tpu.vector_store %arg8[%c48, %c0_21], %19 {strides = array<i32>} : memref<72x1024xf32, #tpu.memory_space<vmem>>, vector<8x256xf32>,
    %c0_22 = arith.constant 0 : index
    %c0_23 = arith.constant 0 : index
    %c37 = arith.constant 37 : index
    %21 = vector.load %arg1[%c0_22, %c0_23, %c37] : memref<4x8x384xf32, #tpu.memory_space<vmem>>, vector<1x8x256xf32>
    %22 = vector.shape_cast %21 : vector<1x8x256xf32> to vector<8x256xf32>
    %c56 = arith.constant 56 : index
    %c0_24 = arith.constant 0 : index
    %23 = vector.load %arg8[%c56, %c0_24] : memref<72x1024xf32, #tpu.memory_space<vmem>>, vector<8x256xf32>
    tpu.vector_store %arg8[%c56, %c0_24], %22 {strides = array<i32>} : memref<72x1024xf32, #tpu.memory_space<vmem>>, vector<8x256xf32>,
    %c0_25 = arith.constant 0 : index
    %c0_26 = arith.constant 0 : index
    %c38 = arith.constant 38 : index
    %24 = vector.load %arg1[%c0_25, %c0_26, %c38] : memref<4x8x384xf32, #tpu.memory_space<vmem>>, vector<1x8x256xf32>
    %25 = vector.shape_cast %24 : vector<1x8x256xf32> to vector<8x256xf32>
    %c64 = arith.constant 64 : index
    %c0_27 = arith.constant 0 : index
    %26 = vector.load %arg8[%c64, %c0_27] : memref<72x1024xf32, #tpu.memory_space<vmem>>, vector<8x256xf32>
    tpu.vector_store %arg8[%c64, %c0_27], %25 {strides = array<i32>} : memref<72x1024xf32, #tpu.memory_space<vmem>>, vector<8x256xf32>,
    %c1_28 = arith.constant 1 : index
    %c0_29 = arith.constant 0 : index
    %c0_30 = arith.constant 0 : index
    %27 = vector.load %arg1[%c1_28, %c0_29, %c0_30] : memref<4x8x384xf32, #tpu.memory_space<vmem>>, vector<1x8x256xf32>
    %28 = vector.shape_cast %27 : vector<1x8x256xf32> to vector<8x256xf32>
    %c0_31 = arith.constant 0 : index
    %c256 = arith.constant 256 : index
    %29 = vector.load %arg8[%c0_31, %c256] : memref<72x1024xf32, #tpu.memory_space<vmem>>, vector<8x256xf32>
    tpu.vector_store %arg8[%c0_31, %c256], %28 {strides = array<i32>} : memref<72x1024xf32, #tpu.memory_space<vmem>>, vector<8x256xf32>,
    %c1_32 = arith.constant 1 : index
    %c0_33 = arith.constant 0 : index
    %c1_34 = arith.constant 1 : index
    %30 = vector.load %arg1[%c1_32, %c0_33, %c1_34] : memref<4x8x384xf32, #tpu.memory_space<vmem>>, vector<1x8x256xf32>
    %31 = vector.shape_cast %30 : vector<1x8x256xf32> to vector<8x256xf32>
    %c8_35 = arith.constant 8 : index
    %c256_36 = arith.constant 256 : index
    %32 = vector.load %arg8[%c8_35, %c256_36] : memref<72x1024xf32, #tpu.memory_space<vmem>>, vector<8x256xf32>
    tpu.vector_store %arg8[%c8_35, %c256_36], %31 {strides = array<i32>} : memref<72x1024xf32, #tpu.memory_space<vmem>>, vector<8x256xf32>,
    %c1_37 = arith.constant 1 : index
    %c0_38 = arith.constant 0 : index
    %c2_39 = arith.constant 2 : index
    %33 = vector.load %arg1[%c1_37, %c0_38, %c2_39] : memref<4x8x384xf32, #tpu.memory_space<vmem>>, vector<1x8x256xf32>
    %34 = vector.shape_cast %33 : vector<1x8x256xf32> to vector<8x256xf32>
    %c16_40 = arith.constant 16 : index
    %c256_41 = arith.constant 256 : index
    %35 = vector.load %arg8[%c16_40, %c256_41] : memref<72x1024xf32, #tpu.memory_space<vmem>>, vector<8x256xf32>
    tpu.vector_store %arg8[%c16_40, %c256_41], %34 {strides = array<i32>} : memref<72x1024xf32, #tpu.memory_space<vmem>>, vector<8x256xf32>,
    %c1_42 = arith.constant 1 : index
    %c0_43 = arith.constant 0 : index
    %c18_44 = arith.constant 18 : index
    %36 = vector.load %arg1[%c1_42, %c0_43, %c18_44] : memref<4x8x384xf32, #tpu.memory_space<vmem>>, vector<1x8x256xf32>
    %37 = vector.shape_cast %36 : vector<1x8x256xf32> to vector<8x256xf32>
    %c24_45 = arith.constant 24 : index
    %c256_46 = arith.constant 256 : index
    %38 = vector.load %arg8[%c24_45, %c256_46] : memref<72x1024xf32, #tpu.memory_space<vmem>>, vector<8x256xf32>
    tpu.vector_store %arg8[%c24_45, %c256_46], %37 {strides = array<i32>} : memref<72x1024xf32, #tpu.memory_space<vmem>>, vector<8x256xf32>,
    %c1_47 = arith.constant 1 : index
    %c0_48 = arith.constant 0 : index
    %c19_49 = arith.constant 19 : index
    %39 = vector.load %arg1[%c1_47, %c0_48, %c19_49] : memref<4x8x384xf32, #tpu.memory_space<vmem>>, vector<1x8x256xf32>
    %40 = vector.shape_cast %39 : vector<1x8x256xf32> to vector<8x256xf32>
    %c32_50 = arith.constant 32 : index
    %c256_51 = arith.constant 256 : index
    %41 = vector.load %arg8[%c32_50, %c256_51] : memref<72x1024xf32, #tpu.memory_space<vmem>>, vector<8x256xf32>
    tpu.vector_store %arg8[%c32_50, %c256_51], %40 {strides = array<i32>} : memref<72x1024xf32, #tpu.memory_space<vmem>>, vector<8x256xf32>,
    %c1_52 = arith.constant 1 : index
    %c0_53 = arith.constant 0 : index
    %c20_54 = arith.constant 20 : index
    %42 = vector.load %arg1[%c1_52, %c0_53, %c20_54] : memref<4x8x384xf32, #tpu.memory_space<vmem>>, vector<1x8x256xf32>
    %43 = vector.shape_cast %42 : vector<1x8x256xf32> to vector<8x256xf32>
    %c40_55 = arith.constant 40 : index
    %c256_56 = arith.constant 256 : index
    %44 = vector.load %arg8[%c40_55, %c256_56] : memref<72x1024xf32, #tpu.memory_space<vmem>>, vector<8x256xf32>
    tpu.vector_store %arg8[%c40_55, %c256_56], %43 {strides = array<i32>} : memref<72x1024xf32, #tpu.memory_space<vmem>>, vector<8x256xf32>,
    %c1_57 = arith.constant 1 : index
    %c0_58 = arith.constant 0 : index
    %c36_59 = arith.constant 36 : index
    %45 = vector.load %arg1[%c1_57, %c0_58, %c36_59] : memref<4x8x384xf32, #tpu.memory_space<vmem>>, vector<1x8x256xf32>
    %46 = vector.shape_cast %45 : vector<1x8x256xf32> to vector<8x256xf32>
    %c48_60 = arith.constant 48 : index
    %c256_61 = arith.constant 256 : index
    %47 = vector.load %arg8[%c48_60, %c256_61] : memref<72x1024xf32, #tpu.memory_space<vmem>>, vector<8x256xf32>
    tpu.vector_store %arg8[%c48_60, %c256_61], %46 {strides = array<i32>} : memref<72x1024xf32, #tpu.memory_space<vmem>>, vector<8x256xf32>,
    %c1_62 = arith.constant 1 : index
    %c0_63 = arith.constant 0 : index
    %c37_64 = arith.constant 37 : index
    %48 = vector.load %arg1[%c1_62, %c0_63, %c37_64] : memref<4x8x384xf32, #tpu.memory_space<vmem>>, vector<1x8x256xf32>
    %49 = vector.shape_cast %48 : vector<1x8x256xf32> to vector<8x256xf32>
    %c56_65 = arith.constant 56 : index
    %c256_66 = arith.constant 256 : index
    %50 = vector.load %arg8[%c56_65, %c256_66] : memref<72x1024xf32, #tpu.memory_space<vmem>>, vector<8x256xf32>
    tpu.vector_store %arg8[%c56_65, %c256_66], %49 {strides = array<i32>} : memref<72x1024xf32, #tpu.memory_space<vmem>>, vector<8x256xf32>,
    %c1_67 = arith.constant 1 : index
    %c0_68 = arith.constant 0 : index
    %c38_69 = arith.constant 38 : index
    %51 = vector.load %arg1[%c1_67, %c0_68, %c38_69] : memref<4x8x384xf32, #tpu.memory_space<vmem>>, vector<1x8x256xf32>
    %52 = vector.shape_cast %51 : vector<1x8x256xf32> to vector<8x256xf32>
    %c64_70 = arith.constant 64 : index
    %c256_71 = arith.constant 256 : index
    %53 = vector.load %arg8[%c64_70, %c256_71] : memref<72x1024xf32, #tpu.memory_space<vmem>>, vector<8x256xf32>
    tpu.vector_store %arg8[%c64_70, %c256_71], %52 {strides = array<i32>} : memref<72x1024xf32, #tpu.memory_space<vmem>>, vector<8x256xf32>,
    %c2_72 = arith.constant 2 : index
    %c0_73 = arith.constant 0 : index
    %c0_74 = arith.constant 0 : index
    %54 = vector.load %arg1[%c2_72, %c0_73, %c0_74] : memref<4x8x384xf32, #tpu.memory_space<vmem>>, vector<1x8x256xf32>
    %55 = vector.shape_cast %54 : vector<1x8x256xf32> to vector<8x256xf32>
    %c0_75 = arith.constant 0 : index
    %c512 = arith.constant 512 : index
    %56 = vector.load %arg8[%c0_75, %c512] : memref<72x1024xf32, #tpu.memory_space<vmem>>, vector<8x256xf32>
    tpu.vector_store %arg8[%c0_75, %c512], %55 {strides = array<i32>} : memref<72x1024xf32, #tpu.memory_space<vmem>>, vector<8x256xf32>,
    %c2_76 = arith.constant 2 : index
    %c0_77 = arith.constant 0 : index
    %c1_78 = arith.constant 1 : index
    %57 = vector.load %arg1[%c2_76, %c0_77, %c1_78] : memref<4x8x384xf32, #tpu.memory_space<vmem>>, vector<1x8x256xf32>
    %58 = vector.shape_cast %57 : vector<1x8x256xf32> to vector<8x256xf32>
    %c8_79 = arith.constant 8 : index
    %c512_80 = arith.constant 512 : index
    %59 = vector.load %arg8[%c8_79, %c512_80] : memref<72x1024xf32, #tpu.memory_space<vmem>>, vector<8x256xf32>
    tpu.vector_store %arg8[%c8_79, %c512_80], %58 {strides = array<i32>} : memref<72x1024xf32, #tpu.memory_space<vmem>>, vector<8x256xf32>,
    %c2_81 = arith.constant 2 : index
    %c0_82 = arith.constant 0 : index
    %c2_83 = arith.constant 2 : index
    %60 = vector.load %arg1[%c2_81, %c0_82, %c2_83] : memref<4x8x384xf32, #tpu.memory_space<vmem>>, vector<1x8x256xf32>
    %61 = vector.shape_cast %60 : vector<1x8x256xf32> to vector<8x256xf32>
    %c16_84 = arith.constant 16 : index
    %c512_85 = arith.constant 512 : index
    %62 = vector.load %arg8[%c16_84, %c512_85] : memref<72x1024xf32, #tpu.memory_space<vmem>>, vector<8x256xf32>
    tpu.vector_store %arg8[%c16_84, %c512_85], %61 {strides = array<i32>} : memref<72x1024xf32, #tpu.memory_space<vmem>>, vector<8x256xf32>,
    %c2_86 = arith.constant 2 : index
    %c0_87 = arith.constant 0 : index
    %c18_88 = arith.constant 18 : index
    %63 = vector.load %arg1[%c2_86, %c0_87, %c18_88] : memref<4x8x384xf32, #tpu.memory_space<vmem>>, vector<1x8x256xf32>
    %64 = vector.shape_cast %63 : vector<1x8x256xf32> to vector<8x256xf32>
    %c24_89 = arith.constant 24 : index
    %c512_90 = arith.constant 512 : index
    %65 = vector.load %arg8[%c24_89, %c512_90] : memref<72x1024xf32, #tpu.memory_space<vmem>>, vector<8x256xf32>
    tpu.vector_store %arg8[%c24_89, %c512_90], %64 {strides = array<i32>} : memref<72x1024xf32, #tpu.memory_space<vmem>>, vector<8x256xf32>,
    %c2_91 = arith.constant 2 : index
    %c0_92 = arith.constant 0 : index
    %c19_93 = arith.constant 19 : index
    %66 = vector.load %arg1[%c2_91, %c0_92, %c19_93] : memref<4x8x384xf32, #tpu.memory_space<vmem>>, vector<1x8x256xf32>
    %67 = vector.shape_cast %66 : vector<1x8x256xf32> to vector<8x256xf32>
    %c32_94 = arith.constant 32 : index
    %c512_95 = arith.constant 512 : index
    %68 = vector.load %arg8[%c32_94, %c512_95] : memref<72x1024xf32, #tpu.memory_space<vmem>>, vector<8x256xf32>
    tpu.vector_store %arg8[%c32_94, %c512_95], %67 {strides = array<i32>} : memref<72x1024xf32, #tpu.memory_space<vmem>>, vector<8x256xf32>,
    %c2_96 = arith.constant 2 : index
    %c0_97 = arith.constant 0 : index
    %c20_98 = arith.constant 20 : index
    %69 = vector.load %arg1[%c2_96, %c0_97, %c20_98] : memref<4x8x384xf32, #tpu.memory_space<vmem>>, vector<1x8x256xf32>
    %70 = vector.shape_cast %69 : vector<1x8x256xf32> to vector<8x256xf32>
    %c40_99 = arith.constant 40 : index
    %c512_100 = arith.constant 512 : index
    %71 = vector.load %arg8[%c40_99, %c512_100] : memref<72x1024xf32, #tpu.memory_space<vmem>>, vector<8x256xf32>
    tpu.vector_store %arg8[%c40_99, %c512_100], %70 {strides = array<i32>} : memref<72x1024xf32, #tpu.memory_space<vmem>>, vector<8x256xf32>,
    %c2_101 = arith.constant 2 : index
    %c0_102 = arith.constant 0 : index
    %c36_103 = arith.constant 36 : index
    %72 = vector.load %arg1[%c2_101, %c0_102, %c36_103] : memref<4x8x384xf32, #tpu.memory_space<vmem>>, vector<1x8x256xf32>
    %73 = vector.shape_cast %72 : vector<1x8x256xf32> to vector<8x256xf32>
    %c48_104 = arith.constant 48 : index
    %c512_105 = arith.constant 512 : index
    %74 = vector.load %arg8[%c48_104, %c512_105] : memref<72x1024xf32, #tpu.memory_space<vmem>>, vector<8x256xf32>
    tpu.vector_store %arg8[%c48_104, %c512_105], %73 {strides = array<i32>} : memref<72x1024xf32, #tpu.memory_space<vmem>>, vector<8x256xf32>,
    %c2_106 = arith.constant 2 : index
    %c0_107 = arith.constant 0 : index
    %c37_108 = arith.constant 37 : index
    %75 = vector.load %arg1[%c2_106, %c0_107, %c37_108] : memref<4x8x384xf32, #tpu.memory_space<vmem>>, vector<1x8x256xf32>
    %76 = vector.shape_cast %75 : vector<1x8x256xf32> to vector<8x256xf32>
    %c56_109 = arith.constant 56 : index
    %c512_110 = arith.constant 512 : index
    %77 = vector.load %arg8[%c56_109, %c512_110] : memref<72x1024xf32, #tpu.memory_space<vmem>>, vector<8x256xf32>
    tpu.vector_store %arg8[%c56_109, %c512_110], %76 {strides = array<i32>} : memref<72x1024xf32, #tpu.memory_space<vmem>>, vector<8x256xf32>,
    %c2_111 = arith.constant 2 : index
    %c0_112 = arith.constant 0 : index
    %c38_113 = arith.constant 38 : index
    %78 = vector.load %arg1[%c2_111, %c0_112, %c38_113] : memref<4x8x384xf32, #tpu.memory_space<vmem>>, vector<1x8x256xf32>
    %79 = vector.shape_cast %78 : vector<1x8x256xf32> to vector<8x256xf32>
    %c64_114 = arith.constant 64 : index
    %c512_115 = arith.constant 512 : index
    %80 = vector.load %arg8[%c64_114, %c512_115] : memref<72x1024xf32, #tpu.memory_space<vmem>>, vector<8x256xf32>
    tpu.vector_store %arg8[%c64_114, %c512_115], %79 {strides = array<i32>} : memref<72x1024xf32, #tpu.memory_space<vmem>>, vector<8x256xf32>,
    %c3 = arith.constant 3 : index
    %c0_116 = arith.constant 0 : index
    %c0_117 = arith.constant 0 : index
    %81 = vector.load %arg1[%c3, %c0_116, %c0_117] : memref<4x8x384xf32, #tpu.memory_space<vmem>>, vector<1x8x256xf32>
    %82 = vector.shape_cast %81 : vector<1x8x256xf32> to vector<8x256xf32>
    %c0_118 = arith.constant 0 : index
    %c768 = arith.constant 768 : index
    %83 = vector.load %arg8[%c0_118, %c768] : memref<72x1024xf32, #tpu.memory_space<vmem>>, vector<8x256xf32>
    tpu.vector_store %arg8[%c0_118, %c768], %82 {strides = array<i32>} : memref<72x1024xf32, #tpu.memory_space<vmem>>, vector<8x256xf32>,
    %c3_119 = arith.constant 3 : index
    %c0_120 = arith.constant 0 : index
    %c1_121 = arith.constant 1 : index
    %84 = vector.load %arg1[%c3_119, %c0_120, %c1_121] : memref<4x8x384xf32, #tpu.memory_space<vmem>>, vector<1x8x256xf32>
    %85 = vector.shape_cast %84 : vector<1x8x256xf32> to vector<8x256xf32>
    %c8_122 = arith.constant 8 : index
    %c768_123 = arith.constant 768 : index
    %86 = vector.load %arg8[%c8_122, %c768_123] : memref<72x1024xf32, #tpu.memory_space<vmem>>, vector<8x256xf32>
    tpu.vector_store %arg8[%c8_122, %c768_123], %85 {strides = array<i32>} : memref<72x1024xf32, #tpu.memory_space<vmem>>, vector<8x256xf32>,
    %c3_124 = arith.constant 3 : index
    %c0_125 = arith.constant 0 : index
    %c2_126 = arith.constant 2 : index
    %87 = vector.load %arg1[%c3_124, %c0_125, %c2_126] : memref<4x8x384xf32, #tpu.memory_space<vmem>>, vector<1x8x256xf32>
    %88 = vector.shape_cast %87 : vector<1x8x256xf32> to vector<8x256xf32>
    %c16_127 = arith.constant 16 : index
    %c768_128 = arith.constant 768 : index
    %89 = vector.load %arg8[%c16_127, %c768_128] : memref<72x1024xf32, #tpu.memory_space<vmem>>, vector<8x256xf32>
    tpu.vector_store %arg8[%c16_127, %c768_128], %88 {strides = array<i32>} : memref<72x1024xf32, #tpu.memory_space<vmem>>, vector<8x256xf32>,
    %c3_129 = arith.constant 3 : index
    %c0_130 = arith.constant 0 : index
    %c18_131 = arith.constant 18 : index
    %90 = vector.load %arg1[%c3_129, %c0_130, %c18_131] : memref<4x8x384xf32, #tpu.memory_space<vmem>>, vector<1x8x256xf32>
    %91 = vector.shape_cast %90 : vector<1x8x256xf32> to vector<8x256xf32>
    %c24_132 = arith.constant 24 : index
    %c768_133 = arith.constant 768 : index
    %92 = vector.load %arg8[%c24_132, %c768_133] : memref<72x1024xf32, #tpu.memory_space<vmem>>, vector<8x256xf32>
    tpu.vector_store %arg8[%c24_132, %c768_133], %91 {strides = array<i32>} : memref<72x1024xf32, #tpu.memory_space<vmem>>, vector<8x256xf32>,
    %c3_134 = arith.constant 3 : index
    %c0_135 = arith.constant 0 : index
    %c19_136 = arith.constant 19 : index
    %93 = vector.load %arg1[%c3_134, %c0_135, %c19_136] : memref<4x8x384xf32, #tpu.memory_space<vmem>>, vector<1x8x256xf32>
    %94 = vector.shape_cast %93 : vector<1x8x256xf32> to vector<8x256xf32>
    %c32_137 = arith.constant 32 : index
    %c768_138 = arith.constant 768 : index
    %95 = vector.load %arg8[%c32_137, %c768_138] : memref<72x1024xf32, #tpu.memory_space<vmem>>, vector<8x256xf32>
    tpu.vector_store %arg8[%c32_137, %c768_138], %94 {strides = array<i32>} : memref<72x1024xf32, #tpu.memory_space<vmem>>, vector<8x256xf32>,
    %c3_139 = arith.constant 3 : index
    %c0_140 = arith.constant 0 : index
    %c20_141 = arith.constant 20 : index
    %96 = vector.load %arg1[%c3_139, %c0_140, %c20_141] : memref<4x8x384xf32, #tpu.memory_space<vmem>>, vector<1x8x256xf32>
    %97 = vector.shape_cast %96 : vector<1x8x256xf32> to vector<8x256xf32>
    %c40_142 = arith.constant 40 : index
    %c768_143 = arith.constant 768 : index
    %98 = vector.load %arg8[%c40_142, %c768_143] : memref<72x1024xf32, #tpu.memory_space<vmem>>, vector<8x256xf32>
    tpu.vector_store %arg8[%c40_142, %c768_143], %97 {strides = array<i32>} : memref<72x1024xf32, #tpu.memory_space<vmem>>, vector<8x256xf32>,
    %c3_144 = arith.constant 3 : index
    %c0_145 = arith.constant 0 : index
    %c36_146 = arith.constant 36 : index
    %99 = vector.load %arg1[%c3_144, %c0_145, %c36_146] : memref<4x8x384xf32, #tpu.memory_space<vmem>>, vector<1x8x256xf32>
    %100 = vector.shape_cast %99 : vector<1x8x256xf32> to vector<8x256xf32>
    %c48_147 = arith.constant 48 : index
    %c768_148 = arith.constant 768 : index
    %101 = vector.load %arg8[%c48_147, %c768_148] : memref<72x1024xf32, #tpu.memory_space<vmem>>, vector<8x256xf32>
    tpu.vector_store %arg8[%c48_147, %c768_148], %100 {strides = array<i32>} : memref<72x1024xf32, #tpu.memory_space<vmem>>, vector<8x256xf32>,
    %c3_149 = arith.constant 3 : index
    %c0_150 = arith.constant 0 : index
    %c37_151 = arith.constant 37 : index
    %102 = vector.load %arg1[%c3_149, %c0_150, %c37_151] : memref<4x8x384xf32, #tpu.memory_space<vmem>>, vector<1x8x256xf32>
    %103 = vector.shape_cast %102 : vector<1x8x256xf32> to vector<8x256xf32>
    %c56_152 = arith.constant 56 : index
    %c768_153 = arith.constant 768 : index
    %104 = vector.load %arg8[%c56_152, %c768_153] : memref<72x1024xf32, #tpu.memory_space<vmem>>, vector<8x256xf32>
    tpu.vector_store %arg8[%c56_152, %c768_153], %103 {strides = array<i32>} : memref<72x1024xf32, #tpu.memory_space<vmem>>, vector<8x256xf32>,
    %c3_154 = arith.constant 3 : index
    %c0_155 = arith.constant 0 : index
    %c38_156 = arith.constant 38 : index
    %105 = vector.load %arg1[%c3_154, %c0_155, %c38_156] : memref<4x8x384xf32, #tpu.memory_space<vmem>>, vector<1x8x256xf32>
    %106 = vector.shape_cast %105 : vector<1x8x256xf32> to vector<8x256xf32>
    %c64_157 = arith.constant 64 : index
    %c768_158 = arith.constant 768 : index
    %107 = vector.load %arg8[%c64_157, %c768_158] : memref<72x1024xf32, #tpu.memory_space<vmem>>, vector<8x256xf32>
    tpu.vector_store %arg8[%c64_157, %c768_158], %106 {strides = array<i32>} : memref<72x1024xf32, #tpu.memory_space<vmem>>, vector<8x256xf32>,
    %c0_159 = arith.constant 0 : index
    %c0_160 = arith.constant 0 : index
    %108 = vector.load %arg2[%c0_159, %c0_160] : memref<8x72xf32, #tpu.memory_space<vmem>>, vector<8x72xf32>
    %c0_161 = arith.constant 0 : index
    %c0_162 = arith.constant 0 : index
    %109 = vector.load %arg8[%c0_161, %c0_162] : memref<72x1024xf32, #tpu.memory_space<vmem>>, vector<72x1024xf32>
    %cst = arith.constant dense<0.000000e+00> : vector<8x1024xf32>
    %110 = tpu.matmul %108, %109, %cst {dimension_numbers = #tpu.dot_dimension_numbers<[1], [0], [0], [1], [0, 0, 1, 1], [], []>} : vector<8x72xf32>, vector<72x1024xf32>, vector<8x1024xf32> -> vector<8x1024xf32>
    %c0_163 = arith.constant 0 : index
    %c0_164 = arith.constant 0 : index
    %111 = vector.load %arg4[%c0_163, %c0_164] : memref<1x256xf32, #tpu.memory_space<vmem>>, vector<1x256xf32>
    %112 = vector.extract_strided_slice %110 {offsets = [0, 0], sizes = [8, 256], strides = [1, 1]} : vector<8x1024xf32> to vector<8x256xf32>
    %c0_165 = arith.constant 0 : index
    %c0_166 = arith.constant 0 : index
    %c0_167 = arith.constant 0 : index
    %113 = vector.load %arg3[%c0_165, %c0_166, %c0_167] : memref<1x8x4xf32, #tpu.memory_space<vmem>>, vector<1x8x1xf32>
    %114 = vector.shape_cast %113 : vector<1x8x1xf32> to vector<8x1xf32>
    %115 = vector.broadcast %114 : vector<8x1xf32> to vector<8x256xf32>
    %116 = arith.addf %112, %115 : vector<8x256xf32>
    %cst_168 = arith.constant 0.000000e+00 : f32
    %117 = vector.broadcast %cst_168 : f32 to vector<8x256xf32>
    %118 = arith.maximumf %116, %117 : vector<8x256xf32>
    %119 = vector.broadcast %111 : vector<1x256xf32> to vector<8x256xf32>
    %120 = arith.mulf %118, %119 : vector<8x256xf32>
    %cst_169 = arith.constant dense<0.000000e+00> : vector<8xf32>
    %121 = vector.multi_reduction <add>, %120, %cst_169 [1] : vector<8x256xf32> to vector<8xf32>
    %122 = vector.shape_cast %121 : vector<8xf32> to vector<8x1xf32>
    %123 = vector.extract_strided_slice %110 {offsets = [0, 256], sizes = [8, 256], strides = [1, 1]} : vector<8x1024xf32> to vector<8x256xf32>
    %c0_170 = arith.constant 0 : index
    %c0_171 = arith.constant 0 : index
    %c1_172 = arith.constant 1 : index
    %124 = vector.load %arg3[%c0_170, %c0_171, %c1_172] : memref<1x8x4xf32, #tpu.memory_space<vmem>>, vector<1x8x1xf32>
    %125 = vector.shape_cast %124 : vector<1x8x1xf32> to vector<8x1xf32>
    %126 = vector.broadcast %125 : vector<8x1xf32> to vector<8x256xf32>
    %127 = arith.addf %123, %126 : vector<8x256xf32>
    %cst_173 = arith.constant 0.000000e+00 : f32
    %128 = vector.broadcast %cst_173 : f32 to vector<8x256xf32>
    %129 = arith.maximumf %127, %128 : vector<8x256xf32>
    %130 = vector.broadcast %111 : vector<1x256xf32> to vector<8x256xf32>
    %131 = arith.mulf %129, %130 : vector<8x256xf32>
    %cst_174 = arith.constant dense<0.000000e+00> : vector<8xf32>
    %132 = vector.multi_reduction <add>, %131, %cst_174 [1] : vector<8x256xf32> to vector<8xf32>
    %133 = vector.shape_cast %132 : vector<8xf32> to vector<8x1xf32>
    %134 = vector.extract_strided_slice %110 {offsets = [0, 512], sizes = [8, 256], strides = [1, 1]} : vector<8x1024xf32> to vector<8x256xf32>
    %c0_175 = arith.constant 0 : index
    %c0_176 = arith.constant 0 : index
    %c2_177 = arith.constant 2 : index
    %135 = vector.load %arg3[%c0_175, %c0_176, %c2_177] : memref<1x8x4xf32, #tpu.memory_space<vmem>>, vector<1x8x1xf32>
    %136 = vector.shape_cast %135 : vector<1x8x1xf32> to vector<8x1xf32>
    %137 = vector.broadcast %136 : vector<8x1xf32> to vector<8x256xf32>
    %138 = arith.addf %134, %137 : vector<8x256xf32>
    %cst_178 = arith.constant 0.000000e+00 : f32
    %139 = vector.broadcast %cst_178 : f32 to vector<8x256xf32>
    %140 = arith.maximumf %138, %139 : vector<8x256xf32>
    %141 = vector.broadcast %111 : vector<1x256xf32> to vector<8x256xf32>
    %142 = arith.mulf %140, %141 : vector<8x256xf32>
    %cst_179 = arith.constant dense<0.000000e+00> : vector<8xf32>
    %143 = vector.multi_reduction <add>, %142, %cst_179 [1] : vector<8x256xf32> to vector<8xf32>
    %144 = vector.shape_cast %143 : vector<8xf32> to vector<8x1xf32>
    %145 = vector.extract_strided_slice %110 {offsets = [0, 768], sizes = [8, 256], strides = [1, 1]} : vector<8x1024xf32> to vector<8x256xf32>
    %c0_180 = arith.constant 0 : index
    %c0_181 = arith.constant 0 : index
    %c3_182 = arith.constant 3 : index
    %146 = vector.load %arg3[%c0_180, %c0_181, %c3_182] : memref<1x8x4xf32, #tpu.memory_space<vmem>>, vector<1x8x1xf32>
    %147 = vector.shape_cast %146 : vector<1x8x1xf32> to vector<8x1xf32>
    %148 = vector.broadcast %147 : vector<8x1xf32> to vector<8x256xf32>
    %149 = arith.addf %145, %148 : vector<8x256xf32>
    %cst_183 = arith.constant 0.000000e+00 : f32
    %150 = vector.broadcast %cst_183 : f32 to vector<8x256xf32>
    %151 = arith.maximumf %149, %150 : vector<8x256xf32>
    %152 = vector.broadcast %111 : vector<1x256xf32> to vector<8x256xf32>
    %153 = arith.mulf %151, %152 : vector<8x256xf32>
    %cst_184 = arith.constant dense<0.000000e+00> : vector<8xf32>
    %154 = vector.multi_reduction <add>, %153, %cst_184 [1] : vector<8x256xf32> to vector<8xf32>
    %155 = vector.shape_cast %154 : vector<8xf32> to vector<8x1xf32>
    %156 = tpu.concatenate %122, %133, %144, %155 in 1 : vector<8x1xf32>, vector<8x1xf32>, vector<8x1xf32>, vector<8x1xf32> -> vector<8x4xf32>
    %157 = tpu.transpose %156, [1, 0] : vector<8x4xf32> -> vector<4x8xf32>
    %c0_185 = arith.constant 0 : index
    %c0_186 = arith.constant 0 : index
    %158 = vector.load %arg5[%c0_185, %c0_186] : memref<8x128xf32, #tpu.memory_space<vmem>>, vector<8x128xf32>
    %cst_187 = arith.constant dense<0.000000e+00> : vector<4x128xf32>
    %159 = tpu.matmul %157, %158, %cst_187 {dimension_numbers = #tpu.dot_dimension_numbers<[1], [0], [0], [1], [0, 0, 1, 1], [], []>} : vector<4x8xf32>, vector<8x128xf32>, vector<4x128xf32> -> vector<4x128xf32>
    %c0_188 = arith.constant 0 : index
    %c0_189 = arith.constant 0 : index
    %c0_190 = arith.constant 0 : index
    %160 = vector.load %arg6[%c0_188, %c0_189, %c0_190] : memref<1x4x128xf32, #tpu.memory_space<vmem>>, vector<1x4x128xf32>
    %161 = vector.shape_cast %160 : vector<1x4x128xf32> to vector<4x128xf32>
    %162 = arith.addf %159, %161 : vector<4x128xf32>
    %c0_191 = arith.constant 0 : index
    %c0_192 = arith.constant 0 : index
    %c0_193 = arith.constant 0 : index
    %163 = vector.load %arg7[%c0_191, %c0_192, %c0_193] : memref<1x4x128xf32, #tpu.memory_space<vmem>>, vector<1x4x128xf32>
    %164 = vector.shape_cast %163 : vector<1x4x128xf32> to vector<4x128xf32>
    %165 = vector.shape_cast %162 : vector<4x128xf32> to vector<1x4x128xf32>
    tpu.vector_store %arg7[%c0_191, %c0_192, %c0_193], %165 {strides = array<i32>} : memref<1x4x128xf32, #tpu.memory_space<vmem>>, vector<1x4x128xf32>,
    return
  }
  func.func @transform_0(%arg0: i32) -> (i32, i32, i32) {
    %c0_i32 = arith.constant 0 : i32
    %c0_i32_0 = arith.constant 0 : i32
    %c0_i32_1 = arith.constant 0 : i32
    return %arg0, %c0_i32, %c0_i32_0 : i32, i32, i32
  }
  func.func @transform_1(%arg0: i32) -> (i32, i32) {
    %c0_i32 = arith.constant 0 : i32
    %c0_i32_0 = arith.constant 0 : i32
    %c0_i32_1 = arith.constant 0 : i32
    return %c0_i32, %c0_i32_0 : i32, i32
  }
  func.func @transform_2(%arg0: i32) -> (i32, i32, i32) {
    %c0_i32 = arith.constant 0 : i32
    %c0_i32_0 = arith.constant 0 : i32
    %c0_i32_1 = arith.constant 0 : i32
    return %arg0, %c0_i32, %c0_i32_0 : i32, i32, i32
  }
  func.func @transform_3(%arg0: i32) -> (i32, i32) {
    %c0_i32 = arith.constant 0 : i32
    %c0_i32_0 = arith.constant 0 : i32
    %c0_i32_1 = arith.constant 0 : i32
    return %c0_i32, %c0_i32_0 : i32, i32
  }
  func.func @transform_4(%arg0: i32) -> (i32, i32) {
    %c0_i32 = arith.constant 0 : i32
    %c0_i32_0 = arith.constant 0 : i32
    %c0_i32_1 = arith.constant 0 : i32
    return %c0_i32, %c0_i32_0 : i32, i32
  }
  func.func @transform_5(%arg0: i32) -> (i32, i32, i32) {
    %c0_i32 = arith.constant 0 : i32
    %c0_i32_0 = arith.constant 0 : i32
    %c0_i32_1 = arith.constant 0 : i32
    return %arg0, %c0_i32, %c0_i32_0 : i32, i32, i32
  }
  func.func @transform_6(%arg0: i32) -> (i32, i32, i32) {
    %c0_i32 = arith.constant 0 : i32
    %c0_i32_0 = arith.constant 0 : i32
    %c0_i32_1 = arith.constant 0 : i32
    return %arg0, %c0_i32, %c0_i32_0 : i32, i32, i32
  }
}

</mosaic_0001>

<llo_original>
// kernel: tpu_custom_call.1
$region0: #{tpu_custom_call.1}
  #allocation0 [shape = 'u32[]', space=smem, size = 0x4, offset = 0x4, fixed_abs, tag = 'smem constant byte address 0x4 - core index']
  #allocation1 [shape = 'u32[72,128]{1,0:T(1,128)}', space=vmem, size = 0x9000, scoped, tag = 'internal scratch']
  #allocation2 [shape = 'f32[72,1024]{1,0:T(8,128)}', space=vmem, size = 0x48000, scoped, tag = 'scratch operand']
  %s0 = inlined_call_operand.hbm [shape: f32[8,8,384], index: 0, kind: input, shape index: {}]
  %s1 = inlined_call_operand.vmem [shape: f32[8,72], index: 1, kind: input, shape index: {}]
  %s2 = inlined_call_operand.vmem [shape: f32[2,8,4], index: 2, kind: input, shape index: {}]
  %s3 = inlined_call_operand.vmem [shape: f32[1,256], index: 3, kind: input, shape index: {}]
  %s4 = inlined_call_operand.vmem [shape: f32[8,128], index: 4, kind: input, shape index: {}]
  %s5 = inlined_call_operand.vmem [shape: f32[2,4,128], index: 5, kind: input, shape index: {}]
  %s6 = inlined_call_operand.hbm [shape: f32[2,4,128], index: 6, kind: output, shape index: {}]
  %s7 = sld [smem:[#allocation0]]
  $region61: #{tpu_custom_call.1} parent=0
    _
  %s9 = ssub.s32 1, %s7
  %s10 = scalar_select 0, %s9, %s7
  $region1: #{tpu_custom_call.1} parent=0
    #allocation3 [shape = 'u8[98304]{0}', space=vmem, size = 0x18000, scoped, tag = 'input window, operand 0']
    #allocation4 [shape = 's32[2]{0}', space=sflag, size = 0x8, scoped, tag = 'scoped memory for tpu_custom_call.1']
    #allocation5 [shape = 's32[2]{0}', space=sflag, size = 0x8, scoped, tag = 'scoped memory for tpu_custom_call.1']
    #allocation6 [shape = 'u8[4096]{0}', space=vmem, size = 0x1000, scoped, tag = 'output window, operand 0']
    %11 = vsyncpa [#allocation4], 0
    %s12 = scalar_lea.sflag [#allocation4], 1
    %13 = vsyncpa %s12, 0
    %14 = vsyncpa [#allocation5], 0
    %s15 = scalar_lea.sflag [#allocation5], 1
    %16 = vsyncpa %s15, 0
    loop: start=0, step=1, limit=4
    $region2: #{tpu_custom_call.1} parent=1 // loop_pre_header
      _
    $region3: #{tpu_custom_call.1} parent=1 // loop_header
      %s18 = sphi 0, %s22
      %p19 = scmp.ge.s32.totalorder %s18, 4
      %s28 = sphi 0, %s30
      %s31 = sphi 0, %s28
      %s32 = sphi 0, %s31
      %s48 = sphi 0, %s32
      %s52 = sphi 0, %s52
      %s54 = sphi 0, %s52
      %s55 = sphi 0, %s54
      %s69 = sphi 0, %s55
      %s75 = sphi 0, %s77
      %s78 = sphi 0, %s75
      %s79 = sphi 0, %s78
      %s95 = sphi 0, %s79
      %s99 = sphi 0, %s99
      %s101 = sphi 0, %s99
      %s102 = sphi 0, %s101
      %s116 = sphi 0, %s102
      %s120 = sphi 0, %s120
      %s122 = sphi 0, %s120
      %s123 = sphi 0, %s122
      %s137 = sphi 0, %s123
      %s143 = sphi 0, %s145
      %s146 = sphi 0, %s143
      %s147 = sphi 0, %s146
      %s163 = sphi 0, %s147
      %s169 = sphi 0, %s171
      %s172 = sphi 0, %s169
      %s173 = sphi 0, %s172
      %s189 = sphi 0, %s173
    $region4: #{tpu_custom_call.1} parent=1 // loop_header_branch
      %21 = sbr.rel (%p19) target = $region8
    $region5: #{tpu_custom_call.1} parent=1 // loop_body
      %s23 = ssub.s32 %s18, 1
      %s24 = ssub.s32 %s18, 2
      %s25 = sadd.s32 %s18, 1
      %s26 = ssub.s32 %s18, %s25
      %p27 = scmp.eq.s32.totalorder %s26, 0
      %s29 = sadd.s32 %s28, 1
      %s30 = scalar_select %p27, %s28, %s29
      %p33 = pneg %p27
      %p34 = scmp.eq.s32.totalorder %s18, 1
      %p35 = por %p33, %p34
      %p36 = scmp.ne.s32.totalorder %s28, %s31
      %p37 = scmp.eq.s32.totalorder %s18, 0
      %p38 = por %p36, %p37
      %p39 = scmp.ne.s32.totalorder %s28, %s31
      %p40 = scmp.eq.s32.totalorder %s23, 1
      %p41 = por %p39, %p40
      %p42 = scmp.ne.s32.totalorder %s31, %s32
      %p43 = scmp.eq.s32.totalorder %s23, 0
      %p44 = por %p42, %p43
      %p45 = scmp.ne.s32.totalorder %s31, %s32
      %p46 = scmp.eq.s32.totalorder %s24, 1
      %p47 = por %p45, %p46
      %p49 = scmp.ne.s32.totalorder %s32, %s48
      %p50 = scmp.eq.s32.totalorder %s24, 0
      %p51 = por %p49, %p50
      %s53 = sadd.s32 %s52, 1
      %p56 = scmp.eq.s32.totalorder %s18, 1
      %p57 = scmp.ne.s32.totalorder %s52, %s54
      %p58 = scmp.eq.s32.totalorder %s18, 0
      %p59 = por %p57, %p58
      %p60 = scmp.ne.s32.totalorder %s52, %s54
      %p61 = scmp.eq.s32.totalorder %s23, 1
      %p62 = por %p60, %p61
      %p63 = scmp.ne.s32.totalorder %s54, %s55
      %p64 = scmp.eq.s32.totalorder %s23, 0
      %p65 = por %p63, %p64
      %p66 = scmp.ne.s32.totalorder %s54, %s55
      %p67 = scmp.eq.s32.totalorder %s24, 1
      %p68 = por %p66, %p67
      %p70 = scmp.ne.s32.totalorder %s55, %s69
      %p71 = scmp.eq.s32.totalorder %s24, 0
      %p72 = por %p70, %p71
      %s73 = ssub.s32 %s18, %s25
      %p74 = scmp.eq.s32.totalorder %s73, 0
      %s76 = sadd.s32 %s75, 1
      %s77 = scalar_select %p74, %s75, %s76
      %p80 = pneg %p74
      %p81 = scmp.eq.s32.totalorder %s18, 1
      %p82 = por %p80, %p81
      %p83 = scmp.ne.s32.totalorder %s75, %s78
      %p84 = scmp.eq.s32.totalorder %s18, 0
      %p85 = por %p83, %p84
      %p86 = scmp.ne.s32.totalorder %s75, %s78
      %p87 = scmp.eq.s32.totalorder %s23, 1
      %p88 = por %p86, %p87
      %p89 = scmp.ne.s32.totalorder %s78, %s79
      %p90 = scmp.eq.s32.totalorder %s23, 0
      %p91 = por %p89, %p90
      %p92 = scmp.ne.s32.totalorder %s78, %s79
      %p93 = scmp.eq.s32.totalorder %s24, 1
      %p94 = por %p92, %p93
      %p96 = scmp.ne.s32.totalorder %s79, %s95
      %p97 = scmp.eq.s32.totalorder %s24, 0
      %p98 = por %p96, %p97
      %s100 = sadd.s32 %s99, 1
      %p103 = scmp.eq.s32.totalorder %s18, 1
      %p104 = scmp.ne.s32.totalorder %s99, %s101
      %p105 = scmp.eq.s32.totalorder %s18, 0
      %p106 = por %p104, %p105
      %p107 = scmp.ne.s32.totalorder %s99, %s101
      %p108 = scmp.eq.s32.totalorder %s23, 1
      %p109 = por %p107, %p108
      %p110 = scmp.ne.s32.totalorder %s101, %s102
      %p111 = scmp.eq.s32.totalorder %s23, 0
      %p112 = por %p110, %p111
      %p113 = scmp.ne.s32.totalorder %s101, %s102
      %p114 = scmp.eq.s32.totalorder %s24, 1
      %p115 = por %p113, %p114
      %p117 = scmp.ne.s32.totalorder %s102, %s116
      %p118 = scmp.eq.s32.totalorder %s24, 0
      %p119 = por %p117, %p118
      %s121 = sadd.s32 %s120, 1
      %p124 = scmp.eq.s32.totalorder %s18, 1
      %p125 = scmp.ne.s32.totalorder %s120, %s122
      %p126 = scmp.eq.s32.totalorder %s18, 0
      %p127 = por %p125, %p126
      %p128 = scmp.ne.s32.totalorder %s120, %s122
      %p129 = scmp.eq.s32.totalorder %s23, 1
      %p130 = por %p128, %p129
      %p131 = scmp.ne.s32.totalorder %s122, %s123
      %p132 = scmp.eq.s32.totalorder %s23, 0
      %p133 = por %p131, %p132
      %p134 = scmp.ne.s32.totalorder %s122, %s123
      %p135 = scmp.eq.s32.totalorder %s24, 1
      %p136 = por %p134, %p135
      %p138 = scmp.ne.s32.totalorder %s123, %s137
      %p139 = scmp.eq.s32.totalorder %s24, 0
      %p140 = por %p138, %p139
      %s141 = ssub.s32 %s18, %s25
      %p142 = scmp.eq.s32.totalorder %s141, 0
      %s144 = sadd.s32 %s143, 1
      %s145 = scalar_select %p142, %s143, %s144
      %p148 = pneg %p142
      %p149 = scmp.eq.s32.totalorder %s18, 1
      %p150 = por %p148, %p149
      %p151 = scmp.ne.s32.totalorder %s143, %s146
      %p152 = scmp.eq.s32.totalorder %s18, 0
      %p153 = por %p151, %p152
      %p154 = scmp.ne.s32.totalorder %s143, %s146
      %p155 = scmp.eq.s32.totalorder %s23, 1
      %p156 = por %p154, %p155
      %p157 = scmp.ne.s32.totalorder %s146, %s147
      %p158 = scmp.eq.s32.totalorder %s23, 0
      %p159 = por %p157, %p158
      %p160 = scmp.ne.s32.totalorder %s146, %s147
      %p161 = scmp.eq.s32.totalorder %s24, 1
      %p162 = por %p160, %p161
      %p164 = scmp.ne.s32.totalorder %s147, %s163
      %p165 = scmp.eq.s32.totalorder %s24, 0
      %p166 = por %p164, %p165
      %s167 = ssub.s32 %s18, %s25
      %p168 = scmp.eq.s32.totalorder %s167, 0
      %s170 = sadd.s32 %s169, 1
      %s171 = scalar_select %p168, %s169, %s170
      %p174 = pneg %p168
      %p175 = scmp.eq.s32.totalorder %s18, 1
      %p176 = por %p174, %p175
      %p177 = scmp.ne.s32.totalorder %s169, %s172
      %p178 = scmp.eq.s32.totalorder %s18, 0
      %p179 = por %p177, %p178
      %p180 = scmp.ne.s32.totalorder %s169, %s172
      %p181 = scmp.eq.s32.totalorder %s23, 1
      %p182 = por %p180, %p181
      %p183 = scmp.ne.s32.totalorder %s172, %s173
      %p184 = scmp.eq.s32.totalorder %s23, 0
      %p185 = por %p183, %p184
      %p186 = scmp.ne.s32.totalorder %s172, %s173
      %p187 = scmp.eq.s32.totalorder %s24, 1
      %p188 = por %p186, %p187
      %p190 = scmp.ne.s32.totalorder %s173, %s189
      %p191 = scmp.eq.s32.totalorder %s24, 0
      %p192 = por %p190, %p191
      %p193 = scmp.le.s32.totalorder 1, %s18
      %p194 = scmp.lt.s32.totalorder %s18, 3
      %p195 = pnand %p193, %p194
      %p196 = pneg %p195
      // Predicated region
      $region9: #{tpu_custom_call.1} parent=5 // pred_check
        _
      $region10: #{tpu_custom_call.1} parent=5 // pred_check_branch
        %198 = sbr.rel (%p195) target = $region12
      $region11: #{tpu_custom_call.1} parent=5 // pred_region
        %s199 = ssub.s32 %s18, 1
        // Predicated region
        $region13: #{tpu_custom_call.1} parent=11 // pred_check
          %p200 = pneg %p65
        $region14: #{tpu_custom_call.1} parent=11 // pred_check_branch
          %202 = sbr.rel (%p200) target = $region16
        $region15: #{tpu_custom_call.1} parent=11 // pred_region
          _
        $region16: #{tpu_custom_call.1} parent=11 // pred_fallthru
          _
        // Predicated region
        $region17: #{tpu_custom_call.1} parent=11 // pred_check
          %p203 = pneg %p112
        $region18: #{tpu_custom_call.1} parent=11 // pred_check_branch
          %205 = sbr.rel (%p203) target = $region20
        $region19: #{tpu_custom_call.1} parent=11 // pred_region
          _
        $region20: #{tpu_custom_call.1} parent=11 // pred_fallthru
          _
        // Predicated region
        $region21: #{tpu_custom_call.1} parent=11 // pred_check
          %p206 = pneg %p133
        $region22: #{tpu_custom_call.1} parent=11 // pred_check_branch
          %208 = sbr.rel (%p206) target = $region24
        $region23: #{tpu_custom_call.1} parent=11 // pred_region
          _
        $region24: #{tpu_custom_call.1} parent=11 // pred_fallthru
          _
      $region12: #{tpu_custom_call.1} parent=5 // pred_fallthru
        _
      %p209 = scmp.lt.s32.totalorder %s18, 2
      // Predicated region
      $region25: #{tpu_custom_call.1} parent=5 // pred_check
        %p210 = pneg %p209
      $region26: #{tpu_custom_call.1} parent=5 // pred_check_branch
        %212 = sbr.rel (%p210) target = $region28
      $region27: #{tpu_custom_call.1} parent=5 // pred_region
        // Predicated region
        $region29: #{tpu_custom_call.1} parent=27 // pred_check
          %p213 = pneg %p38
        $region30: #{tpu_custom_call.1} parent=27 // pred_check_branch
          %215 = sbr.rel (%p213) target = $region32
        $region31: #{tpu_custom_call.1} parent=27 // pred_region
          %s216 = sand.u32 %s28, 1
          %s217 = scalar_lea.sflag [#allocation4], %s216
          %s218 = sand.u32 %s28, 1
          %s219 = smul.addr %s218, 96
          %s220 = scalar_lea.vmem [#allocation3], %s219
          %s221 = smul.u32 4, %s18
          %223 = vsyncadd %s217, 0
          %s224 = smul.addr %s221, 3
          %s225 = smul.addr %s224, 8
          %s226 = scalar_lea.hbm %s0, %s225
          %s227 = sshll.u32 %s226, 4
          %s228 = int_to_ptr.hbm [resolvable:$true] %s227
          %s229 = sshll.u32 %s220, 4
          %s230 = int_to_ptr.vmem [resolvable:$true] %s229
          %235 = dma.hbm_to_vmem [thread:$0]  %s228, 1536, %s230, %s217, 384, 384, 24
        $region32: #{tpu_custom_call.1} parent=27 // pred_fallthru
          _
        // Predicated region
        $region33: #{tpu_custom_call.1} parent=27 // pred_check
          %p236 = pneg %p85
        $region34: #{tpu_custom_call.1} parent=27 // pred_check_branch
          %238 = sbr.rel (%p236) target = $region36
        $region35: #{tpu_custom_call.1} parent=27 // pred_region
          %p239 = scmp.lt.s32.totalorder %s18, 1
          %s240 = scalar_select %p239, %s18, 1
          %s241 = smul.addr %s240, 8
          %s242 = scalar_lea.vmem %s2, %s241
        $region36: #{tpu_custom_call.1} parent=27 // pred_fallthru
          _
        // Predicated region
        $region37: #{tpu_custom_call.1} parent=27 // pred_check
          %p243 = pneg %p153
        $region38: #{tpu_custom_call.1} parent=27 // pred_check_branch
          %245 = sbr.rel (%p243) target = $region40
        $region39: #{tpu_custom_call.1} parent=27 // pred_region
          %p246 = scmp.lt.s32.totalorder %s18, 1
          %s247 = scalar_select %p246, %s18, 1
          %s248 = smul.addr %s247, 4
          %s249 = scalar_lea.vmem %s5, %s248
        $region40: #{tpu_custom_call.1} parent=27 // pred_fallthru
          _
      $region28: #{tpu_custom_call.1} parent=5 // pred_fallthru
        _
      %p250 = scmp.le.s32.totalorder 1, %s18
      %p251 = scmp.lt.s32.totalorder %s18, 3
      %p252 = pnand %p250, %p251
      %p253 = pneg %p252
      // Predicated region
      $region41: #{tpu_custom_call.1} parent=5 // pred_check
        _
      $region42: #{tpu_custom_call.1} parent=5 // pred_check_branch
        %255 = sbr.rel (%p252) target = $region44
      $region43: #{tpu_custom_call.1} parent=5 // pred_region
        %s256 = ssub.s32 %s18, 1
        %s257 = sand.u32 %s31, 1
        %s258 = scalar_lea.sflag [#allocation4], %s257
        %s259 = sand.u32 %s31, 1
        %s260 = smul.addr %s259, 96
        %s261 = scalar_lea.vmem [#allocation3], %s260
        // Predicated region
        $region45: #{tpu_custom_call.1} parent=43 // pred_check
          %p262 = pneg %p44
        $region46: #{tpu_custom_call.1} parent=43 // pred_check_branch
          %264 = sbr.rel (%p262) target = $region48
        $region47: #{tpu_custom_call.1} parent=43 // pred_region
          %266 = dma.done %s258, 1536
        $region48: #{tpu_custom_call.1} parent=43 // pred_fallthru
          _
        %s267 = sand.u32 %s31, 1
        %s268 = scalar_lea.sflag [#allocation4], %s267
        %s269 = sand.u32 %s31, 1
        %s270 = smul.addr %s269, 96
        %s271 = scalar_lea.vmem [#allocation3], %s270
        %p272 = pneg %p44
        %p273 = pneg %p41
        %p274 = pneg %p65
        %p275 = pneg %p62
        %p276 = scmp.lt.s32.totalorder %s23, 1
        %s277 = scalar_select %p276, %s23, 1
        %s278 = smul.addr %s277, 8
        %s279 = scalar_lea.vmem %s2, %s278
        %p280 = pneg %p91
        %p281 = pneg %p88
        %p282 = pneg %p112
        %p283 = pneg %p109
        %p284 = pneg %p133
        %p285 = pneg %p130
        %p286 = scmp.lt.s32.totalorder %s23, 1
        %s287 = scalar_select %p286, %s23, 1
        %s288 = smul.addr %s287, 4
        %s289 = scalar_lea.vmem %s5, %s288
        %p290 = pneg %p159
        %p291 = pneg %p156
        %p292 = pneg %p185
        %p293 = pneg %p182
        %s294 = sand.u32 %s172, 1
        %s295 = scalar_lea.sflag [#allocation5], %s294
        %s296 = sand.u32 %s172, 1
        %s297 = smul.addr %s296, 4
        %s298 = scalar_lea.vmem [#allocation6], %s297
        %s299 = smul.u32 4, %s23
        %p300 = scmp.lt.s32.totalorder %s23, 1
        %s301 = scalar_select %p300, %s23, 1
        %s302 = smul.addr %s301, 8
        %s303 = scalar_lea.vmem %s2, %s302
        %p304 = scmp.lt.s32.totalorder %s23, 1
        %s305 = scalar_select %p304, %s23, 1
        %s306 = smul.addr %s305, 4
        %s307 = scalar_lea.vmem %s5, %s306
        %v308 = vld [vmem:[%s261] sm:$0xff]
        %v309 = vld [vmem:[%s261 + $0x8] sm:$0xff]
        %310 = vst [vmem:[#allocation2] sm:$0xff] %v308
        %311 = vst [vmem:[#allocation2 + $0x8] sm:$0xff] %v309
        %v312 = vld [vmem:[%s261] sm:$0xff]
        %v313 = vld [vmem:[%s261 + $0x8] sm:$0xff]
        %v314 = vld [vmem:[%s261 + $0x10] sm:$0xff]
        %318 = vrot.lane.b32.xlu0 %v312, 127
        %v319 = vpop.permute.xlu0 %318
        %320 = vrot.lane.b32.xlu0 %v313, 127
        %v321 = vpop.permute.xlu0 %320
        %322 = vrot.lane.b32.xlu0 %v314, 127
        %v323 = vpop.permute.xlu0 %322
        %vm324 = vcmask 1039360
        %v325 = vsel %vm324, %v319, %v321
        %v326 = vsel %vm324, %v321, %v323
        %329 = vst [vmem:[#allocation2 + $0x40] sm:$0xff] %v325
        %330 = vst [vmem:[#allocation2 + $0x48] sm:$0xff] %v326
        %v331 = vld [vmem:[%s261] sm:$0xff]
        %v332 = vld [vmem:[%s261 + $0x8] sm:$0xff]
        %v333 = vld [vmem:[%s261 + $0x10] sm:$0xff]
        %337 = vrot.lane.b32.xlu0 %v331, 126
        %v338 = vpop.permute.xlu0 %337
        %339 = vrot.lane.b32.xlu0 %v332, 126
        %v340 = vpop.permute.xlu0 %339
        %341 = vrot.lane.b32.xlu0 %v333, 126
        %v342 = vpop.permute.xlu0 %341
        %vm343 = vcmask 1031168
        %v344 = vsel %vm343, %v338, %v340
        %v345 = vsel %vm343, %v340, %v342
        %348 = vst [vmem:[#allocation2 + $0x80] sm:$0xff] %v344
        %349 = vst [vmem:[#allocation2 + $0x88] sm:$0xff] %v345
        %v350 = vld [vmem:[%s261] sm:$0xff]
        %v351 = vld [vmem:[%s261 + $0x8] sm:$0xff]
        %v352 = vld [vmem:[%s261 + $0x10] sm:$0xff]
        %356 = vrot.lane.b32.xlu0 %v350, 110
        %v357 = vpop.permute.xlu0 %356
        %358 = vrot.lane.b32.xlu0 %v351, 110
        %v359 = vpop.permute.xlu0 %358
        %360 = vrot.lane.b32.xlu0 %v352, 110
        %v361 = vpop.permute.xlu0 %360
        %vm362 = vcmask 900096
        %v363 = vsel %vm362, %v357, %v359
        %v364 = vsel %vm362, %v359, %v361
        %367 = vst [vmem:[#allocation2 + $0xc0] sm:$0xff] %v363
        %368 = vst [vmem:[#allocation2 + $0xc8] sm:$0xff] %v364
        %v369 = vld [vmem:[%s261] sm:$0xff]
        %v370 = vld [vmem:[%s261 + $0x8] sm:$0xff]
        %v371 = vld [vmem:[%s261 + $0x10] sm:$0xff]
        %375 = vrot.lane.b32.xlu0 %v369, 109
        %v376 = vpop.permute.xlu0 %375
        %377 = vrot.lane.b32.xlu0 %v370, 109
        %v378 = vpop.permute.xlu0 %377
        %379 = vrot.lane.b32.xlu0 %v371, 109
        %v380 = vpop.permute.xlu0 %379
        %vm381 = vcmask 891904
        %v382 = vsel %vm381, %v376, %v378
        %v383 = vsel %vm381, %v378, %v380
        %386 = vst [vmem:[#allocation2 + $0x100] sm:$0xff] %v382
        %387 = vst [vmem:[#allocation2 + $0x108] sm:$0xff] %v383
        %v388 = vld [vmem:[%s261] sm:$0xff]
        %v389 = vld [vmem:[%s261 + $0x8] sm:$0xff]
        %v390 = vld [vmem:[%s261 + $0x10] sm:$0xff]
        %394 = vrot.lane.b32.xlu0 %v388, 108
        %v395 = vpop.permute.xlu0 %394
        %396 = vrot.lane.b32.xlu0 %v389, 108
        %v397 = vpop.permute.xlu0 %396
        %398 = vrot.lane.b32.xlu0 %v390, 108
        %v399 = vpop.permute.xlu0 %398
        %vm400 = vcmask 883712
        %v401 = vsel %vm400, %v395, %v397
        %v402 = vsel %vm400, %v397, %v399
        %405 = vst [vmem:[#allocation2 + $0x140] sm:$0xff] %v401
        %406 = vst [vmem:[#allocation2 + $0x148] sm:$0xff] %v402
        %v407 = vld [vmem:[%s261] sm:$0xff]
        %v408 = vld [vmem:[%s261 + $0x8] sm:$0xff]
        %v409 = vld [vmem:[%s261 + $0x10] sm:$0xff]
        %413 = vrot.lane.b32.xlu0 %v407, 92
        %v414 = vpop.permute.xlu0 %413
        %415 = vrot.lane.b32.xlu0 %v408, 92
        %v416 = vpop.permute.xlu0 %415
        %417 = vrot.lane.b32.xlu0 %v409, 92
        %v418 = vpop.permute.xlu0 %417
        %vm419 = vcmask 752640
        %v420 = vsel %vm419, %v414, %v416
        %v421 = vsel %vm419, %v416, %v418
        %424 = vst [vmem:[#allocation2 + $0x180] sm:$0xff] %v420
        %425 = vst [vmem:[#allocation2 + $0x188] sm:$0xff] %v421
        %v426 = vld [vmem:[%s261] sm:$0xff]
        %v427 = vld [vmem:[%s261 + $0x8] sm:$0xff]
        %v428 = vld [vmem:[%s261 + $0x10] sm:$0xff]
        %432 = vrot.lane.b32.xlu0 %v426, 91
        %v433 = vpop.permute.xlu0 %432
        %434 = vrot.lane.b32.xlu0 %v427, 91
        %v435 = vpop.permute.xlu0 %434
        %436 = vrot.lane.b32.xlu0 %v428, 91
        %v437 = vpop.permute.xlu0 %436
        %vm438 = vcmask 744448
        %v439 = vsel %vm438, %v433, %v435
        %v440 = vsel %vm438, %v435, %v437
        %443 = vst [vmem:[#allocation2 + $0x1c0] sm:$0xff] %v439
        %444 = vst [vmem:[#allocation2 + $0x1c8] sm:$0xff] %v440
        %v445 = vld [vmem:[%s261] sm:$0xff]
        %v446 = vld [vmem:[%s261 + $0x8] sm:$0xff]
        %v447 = vld [vmem:[%s261 + $0x10] sm:$0xff]
        %451 = vrot.lane.b32.xlu0 %v445, 90
        %v452 = vpop.permute.xlu0 %451
        %453 = vrot.lane.b32.xlu0 %v446, 90
        %v454 = vpop.permute.xlu0 %453
        %455 = vrot.lane.b32.xlu0 %v447, 90
        %v456 = vpop.permute.xlu0 %455
        %vm457 = vcmask 736256
        %v458 = vsel %vm457, %v452, %v454
        %v459 = vsel %vm457, %v454, %v456
        %462 = vst [vmem:[#allocation2 + $0x200] sm:$0xff] %v458
        %463 = vst [vmem:[#allocation2 + $0x208] sm:$0xff] %v459
        %s464 = scalar_lea.vmem %s261, 24 [#allocation3]
        %v465 = vld [vmem:[%s464] sm:$0xff]
        %v466 = vld [vmem:[%s464 + $0x8] sm:$0xff]
        %467 = vst [vmem:[#allocation2 + $0x10] sm:$0xff] %v465
        %468 = vst [vmem:[#allocation2 + $0x18] sm:$0xff] %v466
        %v469 = vld [vmem:[%s464] sm:$0xff]
        %v470 = vld [vmem:[%s464 + $0x8] sm:$0xff]
        %v471 = vld [vmem:[%s464 + $0x10] sm:$0xff]
        %475 = vrot.lane.b32.xlu0 %v469, 127
        %v476 = vpop.permute.xlu0 %475
        %477 = vrot.lane.b32.xlu0 %v470, 127
        %v478 = vpop.permute.xlu0 %477
        %479 = vrot.lane.b32.xlu0 %v471, 127
        %v480 = vpop.permute.xlu0 %479
        %v481 = vsel %vm324, %v476, %v478
        %v482 = vsel %vm324, %v478, %v480
        %485 = vst [vmem:[#allocation2 + $0x50] sm:$0xff] %v481
        %486 = vst [vmem:[#allocation2 + $0x58] sm:$0xff] %v482
        %v487 = vld [vmem:[%s464] sm:$0xff]
        %v488 = vld [vmem:[%s464 + $0x8] sm:$0xff]
        %v489 = vld [vmem:[%s464 + $0x10] sm:$0xff]
        %493 = vrot.lane.b32.xlu0 %v487, 126
        %v494 = vpop.permute.xlu0 %493
        %495 = vrot.lane.b32.xlu0 %v488, 126
        %v496 = vpop.permute.xlu0 %495
        %497 = vrot.lane.b32.xlu0 %v489, 126
        %v498 = vpop.permute.xlu0 %497
        %v499 = vsel %vm343, %v494, %v496
        %v500 = vsel %vm343, %v496, %v498
        %503 = vst [vmem:[#allocation2 + $0x90] sm:$0xff] %v499
        %504 = vst [vmem:[#allocation2 + $0x98] sm:$0xff] %v500
        %v505 = vld [vmem:[%s464] sm:$0xff]
        %v506 = vld [vmem:[%s464 + $0x8] sm:$0xff]
        %v507 = vld [vmem:[%s464 + $0x10] sm:$0xff]
        %511 = vrot.lane.b32.xlu0 %v505, 110
        %v512 = vpop.permute.xlu0 %511
        %513 = vrot.lane.b32.xlu0 %v506, 110
        %v514 = vpop.permute.xlu0 %513
        %515 = vrot.lane.b32.xlu0 %v507, 110
        %v516 = vpop.permute.xlu0 %515
        %v517 = vsel %vm362, %v512, %v514
        %v518 = vsel %vm362, %v514, %v516
        %521 = vst [vmem:[#allocation2 + $0xd0] sm:$0xff] %v517
        %522 = vst [vmem:[#allocation2 + $0xd8] sm:$0xff] %v518
        %v523 = vld [vmem:[%s464] sm:$0xff]
        %v524 = vld [vmem:[%s464 + $0x8] sm:$0xff]
        %v525 = vld [vmem:[%s464 + $0x10] sm:$0xff]
        %529 = vrot.lane.b32.xlu0 %v523, 109
        %v530 = vpop.permute.xlu0 %529
        %531 = vrot.lane.b32.xlu0 %v524, 109
        %v532 = vpop.permute.xlu0 %531
        %533 = vrot.lane.b32.xlu0 %v525, 109
        %v534 = vpop.permute.xlu0 %533
        %v535 = vsel %vm381, %v530, %v532
        %v536 = vsel %vm381, %v532, %v534
        %539 = vst [vmem:[#allocation2 + $0x110] sm:$0xff] %v535
        %540 = vst [vmem:[#allocation2 + $0x118] sm:$0xff] %v536
        %v541 = vld [vmem:[%s464] sm:$0xff]
        %v542 = vld [vmem:[%s464 + $0x8] sm:$0xff]
        %v543 = vld [vmem:[%s464 + $0x10] sm:$0xff]
        %547 = vrot.lane.b32.xlu0 %v541, 108
        %v548 = vpop.permute.xlu0 %547
        %549 = vrot.lane.b32.xlu0 %v542, 108
        %v550 = vpop.permute.xlu0 %549
        %551 = vrot.lane.b32.xlu0 %v543, 108
        %v552 = vpop.permute.xlu0 %551
        %v553 = vsel %vm400, %v548, %v550
        %v554 = vsel %vm400, %v550, %v552
        %557 = vst [vmem:[#allocation2 + $0x150] sm:$0xff] %v553
        %558 = vst [vmem:[#allocation2 + $0x158] sm:$0xff] %v554
        %v559 = vld [vmem:[%s464] sm:$0xff]
        %v560 = vld [vmem:[%s464 + $0x8] sm:$0xff]
        %v561 = vld [vmem:[%s464 + $0x10] sm:$0xff]
        %565 = vrot.lane.b32.xlu0 %v559, 92
        %v566 = vpop.permute.xlu0 %565
        %567 = vrot.lane.b32.xlu0 %v560, 92
        %v568 = vpop.permute.xlu0 %567
        %569 = vrot.lane.b32.xlu0 %v561, 92
        %v570 = vpop.permute.xlu0 %569
        %v571 = vsel %vm419, %v566, %v568
        %v572 = vsel %vm419, %v568, %v570
        %575 = vst [vmem:[#allocation2 + $0x190] sm:$0xff] %v571
        %576 = vst [vmem:[#allocation2 + $0x198] sm:$0xff] %v572
        %v577 = vld [vmem:[%s464] sm:$0xff]
        %v578 = vld [vmem:[%s464 + $0x8] sm:$0xff]
        %v579 = vld [vmem:[%s464 + $0x10] sm:$0xff]
        %583 = vrot.lane.b32.xlu0 %v577, 91
        %v584 = vpop.permute.xlu0 %583
        %585 = vrot.lane.b32.xlu0 %v578, 91
        %v586 = vpop.permute.xlu0 %585
        %587 = vrot.lane.b32.xlu0 %v579, 91
        %v588 = vpop.permute.xlu0 %587
        %v589 = vsel %vm438, %v584, %v586
        %v590 = vsel %vm438, %v586, %v588
        %593 = vst [vmem:[#allocation2 + $0x1d0] sm:$0xff] %v589
        %594 = vst [vmem:[#allocation2 + $0x1d8] sm:$0xff] %v590
        %v595 = vld [vmem:[%s464] sm:$0xff]
        %v596 = vld [vmem:[%s464 + $0x8] sm:$0xff]
        %v597 = vld [vmem:[%s464 + $0x10] sm:$0xff]
        %601 = vrot.lane.b32.xlu0 %v595, 90
        %v602 = vpop.permute.xlu0 %601
        %603 = vrot.lane.b32.xlu0 %v596, 90
        %v604 = vpop.permute.xlu0 %603
        %605 = vrot.lane.b32.xlu0 %v597, 90
        %v606 = vpop.permute.xlu0 %605
        %v607 = vsel %vm457, %v602, %v604
        %v608 = vsel %vm457, %v604, %v606
        %611 = vst [vmem:[#allocation2 + $0x210] sm:$0xff] %v607
        %612 = vst [vmem:[#allocation2 + $0x218] sm:$0xff] %v608
        %s613 = scalar_lea.vmem %s261, 48 [#allocation3]
        %v614 = vld [vmem:[%s613] sm:$0xff]
        %v615 = vld [vmem:[%s613 + $0x8] sm:$0xff]
        %616 = vst [vmem:[#allocation2 + $0x20] sm:$0xff] %v614
        %617 = vst [vmem:[#allocation2 + $0x28] sm:$0xff] %v615
        %v618 = vld [vmem:[%s613] sm:$0xff]
        %v619 = vld [vmem:[%s613 + $0x8] sm:$0xff]
        %v620 = vld [vmem:[%s613 + $0x10] sm:$0xff]
        %624 = vrot.lane.b32.xlu0 %v618, 127
        %v625 = vpop.permute.xlu0 %624
        %626 = vrot.lane.b32.xlu0 %v619, 127
        %v627 = vpop.permute.xlu0 %626
        %628 = vrot.lane.b32.xlu0 %v620, 127
        %v629 = vpop.permute.xlu0 %628
        %v630 = vsel %vm324, %v625, %v627
        %v631 = vsel %vm324, %v627, %v629
        %634 = vst [vmem:[#allocation2 + $0x60] sm:$0xff] %v630
        %635 = vst [vmem:[#allocation2 + $0x68] sm:$0xff] %v631
        %v636 = vld [vmem:[%s613] sm:$0xff]
        %v637 = vld [vmem:[%s613 + $0x8] sm:$0xff]
        %v638 = vld [vmem:[%s613 + $0x10] sm:$0xff]
        %642 = vrot.lane.b32.xlu0 %v636, 126
        %v643 = vpop.permute.xlu0 %642
        %644 = vrot.lane.b32.xlu0 %v637, 126
        %v645 = vpop.permute.xlu0 %644
        %646 = vrot.lane.b32.xlu0 %v638, 126
        %v647 = vpop.permute.xlu0 %646
        %v648 = vsel %vm343, %v643, %v645
        %v649 = vsel %vm343, %v645, %v647
        %652 = vst [vmem:[#allocation2 + $0xa0] sm:$0xff] %v648
        %653 = vst [vmem:[#allocation2 + $0xa8] sm:$0xff] %v649
        %v654 = vld [vmem:[%s613] sm:$0xff]
        %v655 = vld [vmem:[%s613 + $0x8] sm:$0xff]
        %v656 = vld [vmem:[%s613 + $0x10] sm:$0xff]
        %660 = vrot.lane.b32.xlu0 %v654, 110
        %v661 = vpop.permute.xlu0 %660
        %662 = vrot.lane.b32.xlu0 %v655, 110
        %v663 = vpop.permute.xlu0 %662
        %664 = vrot.lane.b32.xlu0 %v656, 110
        %v665 = vpop.permute.xlu0 %664
        %v666 = vsel %vm362, %v661, %v663
        %v667 = vsel %vm362, %v663, %v665
        %670 = vst [vmem:[#allocation2 + $0xe0] sm:$0xff] %v666
        %671 = vst [vmem:[#allocation2 + $0xe8] sm:$0xff] %v667
        %v672 = vld [vmem:[%s613] sm:$0xff]
        %v673 = vld [vmem:[%s613 + $0x8] sm:$0xff]
        %v674 = vld [vmem:[%s613 + $0x10] sm:$0xff]
        %678 = vrot.lane.b32.xlu0 %v672, 109
        %v679 = vpop.permute.xlu0 %678
        %680 = vrot.lane.b32.xlu0 %v673, 109
        %v681 = vpop.permute.xlu0 %680
        %682 = vrot.lane.b32.xlu0 %v674, 109
        %v683 = vpop.permute.xlu0 %682
        %v684 = vsel %vm381, %v679, %v681
        %v685 = vsel %vm381, %v681, %v683
        %688 = vst [vmem:[#allocation2 + $0x120] sm:$0xff] %v684
        %689 = vst [vmem:[#allocation2 + $0x128] sm:$0xff] %v685
        %v690 = vld [vmem:[%s613] sm:$0xff]
        %v691 = vld [vmem:[%s613 + $0x8] sm:$0xff]
        %v692 = vld [vmem:[%s613 + $0x10] sm:$0xff]
        %696 = vrot.lane.b32.xlu0 %v690, 108
        %v697 = vpop.permute.xlu0 %696
        %698 = vrot.lane.b32.xlu0 %v691, 108
        %v699 = vpop.permute.xlu0 %698
        %700 = vrot.lane.b32.xlu0 %v692, 108
        %v701 = vpop.permute.xlu0 %700
        %v702 = vsel %vm400, %v697, %v699
        %v703 = vsel %vm400, %v699, %v701
        %706 = vst [vmem:[#allocation2 + $0x160] sm:$0xff] %v702
        %707 = vst [vmem:[#allocation2 + $0x168] sm:$0xff] %v703
        %v708 = vld [vmem:[%s613] sm:$0xff]
        %v709 = vld [vmem:[%s613 + $0x8] sm:$0xff]
        %v710 = vld [vmem:[%s613 + $0x10] sm:$0xff]
        %714 = vrot.lane.b32.xlu0 %v708, 92
        %v715 = vpop.permute.xlu0 %714
        %716 = vrot.lane.b32.xlu0 %v709, 92
        %v717 = vpop.permute.xlu0 %716
        %718 = vrot.lane.b32.xlu0 %v710, 92
        %v719 = vpop.permute.xlu0 %718
        %v720 = vsel %vm419, %v715, %v717
        %v721 = vsel %vm419, %v717, %v719
        %724 = vst [vmem:[#allocation2 + $0x1a0] sm:$0xff] %v720
        %725 = vst [vmem:[#allocation2 + $0x1a8] sm:$0xff] %v721
        %v726 = vld [vmem:[%s613] sm:$0xff]
        %v727 = vld [vmem:[%s613 + $0x8] sm:$0xff]
        %v728 = vld [vmem:[%s613 + $0x10] sm:$0xff]
        %732 = vrot.lane.b32.xlu0 %v726, 91
        %v733 = vpop.permute.xlu0 %732
        %734 = vrot.lane.b32.xlu0 %v727, 91
        %v735 = vpop.permute.xlu0 %734
        %736 = vrot.lane.b32.xlu0 %v728, 91
        %v737 = vpop.permute.xlu0 %736
        %v738 = vsel %vm438, %v733, %v735
        %v739 = vsel %vm438, %v735, %v737
        %742 = vst [vmem:[#allocation2 + $0x1e0] sm:$0xff] %v738
        %743 = vst [vmem:[#allocation2 + $0x1e8] sm:$0xff] %v739
        %v744 = vld [vmem:[%s613] sm:$0xff]
        %v745 = vld [vmem:[%s613 + $0x8] sm:$0xff]
        %v746 = vld [vmem:[%s613 + $0x10] sm:$0xff]
        %750 = vrot.lane.b32.xlu0 %v744, 90
        %v751 = vpop.permute.xlu0 %750
        %752 = vrot.lane.b32.xlu0 %v745, 90
        %v753 = vpop.permute.xlu0 %752
        %754 = vrot.lane.b32.xlu0 %v746, 90
        %v755 = vpop.permute.xlu0 %754
        %v756 = vsel %vm457, %v751, %v753
        %v757 = vsel %vm457, %v753, %v755
        %760 = vst [vmem:[#allocation2 + $0x220] sm:$0xff] %v756
        %761 = vst [vmem:[#allocation2 + $0x228] sm:$0xff] %v757
        %s762 = scalar_lea.vmem %s261, 72 [#allocation3]
        %v763 = vld [vmem:[%s762] sm:$0xff]
        %v764 = vld [vmem:[%s762 + $0x8] sm:$0xff]
        %765 = vst [vmem:[#allocation2 + $0x30] sm:$0xff] %v763
        %766 = vst [vmem:[#allocation2 + $0x38] sm:$0xff] %v764
        %v767 = vld [vmem:[%s762] sm:$0xff]
        %v768 = vld [vmem:[%s762 + $0x8] sm:$0xff]
        %v769 = vld [vmem:[%s762 + $0x10] sm:$0xff]
        %773 = vrot.lane.b32.xlu0 %v767, 127
        %v774 = vpop.permute.xlu0 %773
        %775 = vrot.lane.b32.xlu0 %v768, 127
        %v776 = vpop.permute.xlu0 %775
        %777 = vrot.lane.b32.xlu0 %v769, 127
        %v778 = vpop.permute.xlu0 %777
        %v779 = vsel %vm324, %v774, %v776
        %v780 = vsel %vm324, %v776, %v778
        %783 = vst [vmem:[#allocation2 + $0x70] sm:$0xff] %v779
        %784 = vst [vmem:[#allocation2 + $0x78] sm:$0xff] %v780
        %v785 = vld [vmem:[%s762] sm:$0xff]
        %v786 = vld [vmem:[%s762 + $0x8] sm:$0xff]
        %v787 = vld [vmem:[%s762 + $0x10] sm:$0xff]
        %791 = vrot.lane.b32.xlu0 %v785, 126
        %v792 = vpop.permute.xlu0 %791
        %793 = vrot.lane.b32.xlu0 %v786, 126
        %v794 = vpop.permute.xlu0 %793
        %795 = vrot.lane.b32.xlu0 %v787, 126
        %v796 = vpop.permute.xlu0 %795
        %v797 = vsel %vm343, %v792, %v794
        %v798 = vsel %vm343, %v794, %v796
        %801 = vst [vmem:[#allocation2 + $0xb0] sm:$0xff] %v797
        %802 = vst [vmem:[#allocation2 + $0xb8] sm:$0xff] %v798
        %v803 = vld [vmem:[%s762] sm:$0xff]
        %v804 = vld [vmem:[%s762 + $0x8] sm:$0xff]
        %v805 = vld [vmem:[%s762 + $0x10] sm:$0xff]
        %809 = vrot.lane.b32.xlu0 %v803, 110
        %v810 = vpop.permute.xlu0 %809
        %811 = vrot.lane.b32.xlu0 %v804, 110
        %v812 = vpop.permute.xlu0 %811
        %813 = vrot.lane.b32.xlu0 %v805, 110
        %v814 = vpop.permute.xlu0 %813
        %v815 = vsel %vm362, %v810, %v812
        %v816 = vsel %vm362, %v812, %v814
        %819 = vst [vmem:[#allocation2 + $0xf0] sm:$0xff] %v815
        %820 = vst [vmem:[#allocation2 + $0xf8] sm:$0xff] %v816
        %v821 = vld [vmem:[%s762] sm:$0xff]
        %v822 = vld [vmem:[%s762 + $0x8] sm:$0xff]
        %v823 = vld [vmem:[%s762 + $0x10] sm:$0xff]
        %827 = vrot.lane.b32.xlu0 %v821, 109
        %v828 = vpop.permute.xlu0 %827
        %829 = vrot.lane.b32.xlu0 %v822, 109
        %v830 = vpop.permute.xlu0 %829
        %831 = vrot.lane.b32.xlu0 %v823, 109
        %v832 = vpop.permute.xlu0 %831
        %v833 = vsel %vm381, %v828, %v830
        %v834 = vsel %vm381, %v830, %v832
        %837 = vst [vmem:[#allocation2 + $0x130] sm:$0xff] %v833
        %838 = vst [vmem:[#allocation2 + $0x138] sm:$0xff] %v834
        %v839 = vld [vmem:[%s762] sm:$0xff]
        %v840 = vld [vmem:[%s762 + $0x8] sm:$0xff]
        %v841 = vld [vmem:[%s762 + $0x10] sm:$0xff]
        %845 = vrot.lane.b32.xlu0 %v839, 108
        %v846 = vpop.permute.xlu0 %845
        %847 = vrot.lane.b32.xlu0 %v840, 108
        %v848 = vpop.permute.xlu0 %847
        %849 = vrot.lane.b32.xlu0 %v841, 108
        %v850 = vpop.permute.xlu0 %849
        %v851 = vsel %vm400, %v846, %v848
        %v852 = vsel %vm400, %v848, %v850
        %855 = vst [vmem:[#allocation2 + $0x170] sm:$0xff] %v851
        %856 = vst [vmem:[#allocation2 + $0x178] sm:$0xff] %v852
        %v857 = vld [vmem:[%s762] sm:$0xff]
        %v858 = vld [vmem:[%s762 + $0x8] sm:$0xff]
        %v859 = vld [vmem:[%s762 + $0x10] sm:$0xff]
        %863 = vrot.lane.b32.xlu0 %v857, 92
        %v864 = vpop.permute.xlu0 %863
        %865 = vrot.lane.b32.xlu0 %v858, 92
        %v866 = vpop.permute.xlu0 %865
        %867 = vrot.lane.b32.xlu0 %v859, 92
        %v868 = vpop.permute.xlu0 %867
        %v869 = vsel %vm419, %v864, %v866
        %v870 = vsel %vm419, %v866, %v868
        %873 = vst [vmem:[#allocation2 + $0x1b0] sm:$0xff] %v869
        %874 = vst [vmem:[#allocation2 + $0x1b8] sm:$0xff] %v870
        %v875 = vld [vmem:[%s762] sm:$0xff]
        %v876 = vld [vmem:[%s762 + $0x8] sm:$0xff]
        %v877 = vld [vmem:[%s762 + $0x10] sm:$0xff]
        %881 = vrot.lane.b32.xlu0 %v875, 91
        %v882 = vpop.permute.xlu0 %881
        %883 = vrot.lane.b32.xlu0 %v876, 91
        %v884 = vpop.permute.xlu0 %883
        %885 = vrot.lane.b32.xlu0 %v877, 91
        %v886 = vpop.permute.xlu0 %885
        %v887 = vsel %vm438, %v882, %v884
        %v888 = vsel %vm438, %v884, %v886
        %891 = vst [vmem:[#allocation2 + $0x1f0] sm:$0xff] %v887
        %892 = vst [vmem:[#allocation2 + $0x1f8] sm:$0xff] %v888
        %v893 = vld [vmem:[%s762] sm:$0xff]
        %v894 = vld [vmem:[%s762 + $0x8] sm:$0xff]
        %v895 = vld [vmem:[%s762 + $0x10] sm:$0xff]
        %899 = vrot.lane.b32.xlu0 %v893, 90
        %v900 = vpop.permute.xlu0 %899
        %901 = vrot.lane.b32.xlu0 %v894, 90
        %v902 = vpop.permute.xlu0 %901
        %903 = vrot.lane.b32.xlu0 %v895, 90
        %v904 = vpop.permute.xlu0 %903
        %v905 = vsel %vm457, %v900, %v902
        %v906 = vsel %vm457, %v902, %v904
        %909 = vst [vmem:[#allocation2 + $0x230] sm:$0xff] %v905
        %910 = vst [vmem:[#allocation2 + $0x238] sm:$0xff] %v906
        %v911 = vld [vmem:[%s1] sm:$0xff]
        %v912 = vld [vmem:[#allocation2] sm:$0xff]
        %v913 = vld [vmem:[#allocation2 + $0x8] sm:$0xff]
        %v914 = vld [vmem:[#allocation2 + $0x10] sm:$0xff]
        %v915 = vld [vmem:[#allocation2 + $0x18] sm:$0xff]
        %v916 = vld [vmem:[#allocation2 + $0x20] sm:$0xff]
        %v917 = vld [vmem:[#allocation2 + $0x28] sm:$0xff]
        %v918 = vld [vmem:[#allocation2 + $0x30] sm:$0xff]
        %v919 = vld [vmem:[#allocation2 + $0x38] sm:$0xff]
        %v920 = vld [vmem:[#allocation2 + $0x40] sm:$0xff]
        %v921 = vld [vmem:[#allocation2 + $0x48] sm:$0xff]
        %v922 = vld [vmem:[#allocation2 + $0x50] sm:$0xff]
        %v923 = vld [vmem:[#allocation2 + $0x58] sm:$0xff]
        %v924 = vld [vmem:[#allocation2 + $0x60] sm:$0xff]
        %v925 = vld [vmem:[#allocation2 + $0x68] sm:$0xff]
        %v926 = vld [vmem:[#allocation2 + $0x70] sm:$0xff]
        %v927 = vld [vmem:[#allocation2 + $0x78] sm:$0xff]
        %v928 = vld [vmem:[#allocation2 + $0x80] sm:$0xff]
        %v929 = vld [vmem:[#allocation2 + $0x88] sm:$0xff]
        %v930 = vld [vmem:[#allocation2 + $0x90] sm:$0xff]
        %v931 = vld [vmem:[#allocation2 + $0x98] sm:$0xff]
        %v932 = vld [vmem:[#allocation2 + $0xa0] sm:$0xff]
        %v933 = vld [vmem:[#allocation2 + $0xa8] sm:$0xff]
        %v934 = vld [vmem:[#allocation2 + $0xb0] sm:$0xff]
        %v935 = vld [vmem:[#allocation2 + $0xb8] sm:$0xff]
        %v936 = vld [vmem:[#allocation2 + $0xc0] sm:$0xff]
        %v937 = vld [vmem:[#allocation2 + $0xc8] sm:$0xff]
        %v938 = vld [vmem:[#allocation2 + $0xd0] sm:$0xff]
        %v939 = vld [vmem:[#allocation2 + $0xd8] sm:$0xff]
        %v940 = vld [vmem:[#allocation2 + $0xe0] sm:$0xff]
        %v941 = vld [vmem:[#allocation2 + $0xe8] sm:$0xff]
        %v942 = vld [vmem:[#allocation2 + $0xf0] sm:$0xff]
        %v943 = vld [vmem:[#allocation2 + $0xf8] sm:$0xff]
        %v944 = vld [vmem:[#allocation2 + $0x100] sm:$0xff]
        %v945 = vld [vmem:[#allocation2 + $0x108] sm:$0xff]
        %v946 = vld [vmem:[#allocation2 + $0x110] sm:$0xff]
        %v947 = vld [vmem:[#allocation2 + $0x118] sm:$0xff]
        %v948 = vld [vmem:[#allocation2 + $0x120] sm:$0xff]
        %v949 = vld [vmem:[#allocation2 + $0x128] sm:$0xff]
        %v950 = vld [vmem:[#allocation2 + $0x130] sm:$0xff]
        %v951 = vld [vmem:[#allocation2 + $0x138] sm:$0xff]
        %v952 = vld [vmem:[#allocation2 + $0x140] sm:$0xff]
        %v953 = vld [vmem:[#allocation2 + $0x148] sm:$0xff]
        %v954 = vld [vmem:[#allocation2 + $0x150] sm:$0xff]
        %v955 = vld [vmem:[#allocation2 + $0x158] sm:$0xff]
        %v956 = vld [vmem:[#allocation2 + $0x160] sm:$0xff]
        %v957 = vld [vmem:[#allocation2 + $0x168] sm:$0xff]
        %v958 = vld [vmem:[#allocation2 + $0x170] sm:$0xff]
        %v959 = vld [vmem:[#allocation2 + $0x178] sm:$0xff]
        %v960 = vld [vmem:[#allocation2 + $0x180] sm:$0xff]
        %v961 = vld [vmem:[#allocation2 + $0x188] sm:$0xff]
        %v962 = vld [vmem:[#allocation2 + $0x190] sm:$0xff]
        %v963 = vld [vmem:[#allocation2 + $0x198] sm:$0xff]
        %v964 = vld [vmem:[#allocation2 + $0x1a0] sm:$0xff]
        %v965 = vld [vmem:[#allocation2 + $0x1a8] sm:$0xff]
        %v966 = vld [vmem:[#allocation2 + $0x1b0] sm:$0xff]
        %v967 = vld [vmem:[#allocation2 + $0x1b8] sm:$0xff]
        %v968 = vld [vmem:[#allocation2 + $0x1c0] sm:$0xff]
        %v969 = vld [vmem:[#allocation2 + $0x1c8] sm:$0xff]
        %v970 = vld [vmem:[#allocation2 + $0x1d0] sm:$0xff]
        %v971 = vld [vmem:[#allocation2 + $0x1d8] sm:$0xff]
        %v972 = vld [vmem:[#allocation2 + $0x1e0] sm:$0xff]
        %v973 = vld [vmem:[#allocation2 + $0x1e8] sm:$0xff]
        %v974 = vld [vmem:[#allocation2 + $0x1f0] sm:$0xff]
        %v975 = vld [vmem:[#allocation2 + $0x1f8] sm:$0xff]
        %v976 = vld [vmem:[#allocation2 + $0x200] sm:$0xff]
        %v977 = vld [vmem:[#allocation2 + $0x208] sm:$0xff]
        %v978 = vld [vmem:[#allocation2 + $0x210] sm:$0xff]
        %v979 = vld [vmem:[#allocation2 + $0x218] sm:$0xff]
        %v980 = vld [vmem:[#allocation2 + $0x220] sm:$0xff]
        %v981 = vld [vmem:[#allocation2 + $0x228] sm:$0xff]
        %v982 = vld [vmem:[#allocation2 + $0x230] sm:$0xff]
        %v983 = vld [vmem:[#allocation2 + $0x238] sm:$0xff]
        %vm984 = vcmask 588800
        %v986 = vsel %vm984, %v911, 0
        %988 = vmatpush.msra.mxu0 0.0
        %989 = vmatpush.msra.mxu0 0.0
        %990 = vmatpush.msra.mxu0 0.0
        %991 = vmatpush.msra.mxu0 0.0
        %992 = vmatpush.msra.mxu0 0.0
        %993 = vmatpush.msra.mxu0 0.0
        %994 = vmatpush.msra.mxu0 0.0
        %995 = vmatpush.msra.mxu0 %v976
        %996 = vmatpush.msra.mxu0 %v968
        %997 = vmatpush.msra.mxu0 %v960
        %998 = vmatpush.msra.mxu0 %v952
        %999 = vmatpush.msra.mxu0 %v944
        %1000 = vmatpush.msra.mxu0 %v936
        %1001 = vmatpush.msra.mxu0 %v928
        %1002 = vmatpush.msra.mxu0 %v920
        %1003 = vmatpush.msra.mxu0 %v912
        %1004 = vmatmul.f32.gmra.mxu0 %v986
        %v1005 = vpop.f32.mrf.mxu0
        %v1006 = vadd.f32 0.0, %v1005
        %1007 = vdwg.mxu0
        %1008 = vmatpush.msra.mxu0 0.0
        %1009 = vmatpush.msra.mxu0 0.0
        %1010 = vmatpush.msra.mxu0 0.0
        %1011 = vmatpush.msra.mxu0 0.0
        %1012 = vmatpush.msra.mxu0 0.0
        %1013 = vmatpush.msra.mxu0 0.0
        %1014 = vmatpush.msra.mxu0 0.0
        %1015 = vmatpush.msra.mxu0 %v977
        %1016 = vmatpush.msra.mxu0 %v969
        %1017 = vmatpush.msra.mxu0 %v961
        %1018 = vmatpush.msra.mxu0 %v953
        %1019 = vmatpush.msra.mxu0 %v945
        %1020 = vmatpush.msra.mxu0 %v937
        %1021 = vmatpush.msra.mxu0 %v929
        %1022 = vmatpush.msra.mxu0 %v921
        %1023 = vmatpush.msra.mxu0 %v913
        %1024 = vmatmul.f32.gmra.mxu0 %v986
        %v1025 = vpop.f32.mrf.mxu0
        %v1026 = vadd.f32 0.0, %v1025
        %1027 = vdwg.mxu0
        %1028 = vmatpush.msra.mxu0 0.0
        %1029 = vmatpush.msra.mxu0 0.0
        %1030 = vmatpush.msra.mxu0 0.0
        %1031 = vmatpush.msra.mxu0 0.0
        %1032 = vmatpush.msra.mxu0 0.0
        %1033 = vmatpush.msra.mxu0 0.0
        %1034 = vmatpush.msra.mxu0 0.0
        %1035 = vmatpush.msra.mxu0 %v978
        %1036 = vmatpush.msra.mxu0 %v970
        %1037 = vmatpush.msra.mxu0 %v962
        %1038 = vmatpush.msra.mxu0 %v954
        %1039 = vmatpush.msra.mxu0 %v946
        %1040 = vmatpush.msra.mxu0 %v938
        %1041 = vmatpush.msra.mxu0 %v930
        %1042 = vmatpush.msra.mxu0 %v922
        %1043 = vmatpush.msra.mxu0 %v914
        %1044 = vmatmul.f32.gmra.mxu0 %v986
        %v1045 = vpop.f32.mrf.mxu0
        %v1046 = vadd.f32 0.0, %v1045
        %1047 = vdwg.mxu0
        %1048 = vmatpush.msra.mxu0 0.0
        %1049 = vmatpush.msra.mxu0 0.0
        %1050 = vmatpush.msra.mxu0 0.0
        %1051 = vmatpush.msra.mxu0 0.0
        %1052 = vmatpush.msra.mxu0 0.0
        %1053 = vmatpush.msra.mxu0 0.0
        %1054 = vmatpush.msra.mxu0 0.0
        %1055 = vmatpush.msra.mxu0 %v979
        %1056 = vmatpush.msra.mxu0 %v971
        %1057 = vmatpush.msra.mxu0 %v963
        %1058 = vmatpush.msra.mxu0 %v955
        %1059 = vmatpush.msra.mxu0 %v947
        %1060 = vmatpush.msra.mxu0 %v939
        %1061 = vmatpush.msra.mxu0 %v931
        %1062 = vmatpush.msra.mxu0 %v923
        %1063 = vmatpush.msra.mxu0 %v915
        %1064 = vmatmul.f32.gmra.mxu0 %v986
        %v1065 = vpop.f32.mrf.mxu0
        %v1066 = vadd.f32 0.0, %v1065
        %1067 = vdwg.mxu0
        %1068 = vmatpush.msra.mxu0 0.0
        %1069 = vmatpush.msra.mxu0 0.0
        %1070 = vmatpush.msra.mxu0 0.0
        %1071 = vmatpush.msra.mxu0 0.0
        %1072 = vmatpush.msra.mxu0 0.0
        %1073 = vmatpush.msra.mxu0 0.0
        %1074 = vmatpush.msra.mxu0 0.0
        %1075 = vmatpush.msra.mxu0 %v980
        %1076 = vmatpush.msra.mxu0 %v972
        %1077 = vmatpush.msra.mxu0 %v964
        %1078 = vmatpush.msra.mxu0 %v956
        %1079 = vmatpush.msra.mxu0 %v948
        %1080 = vmatpush.msra.mxu0 %v940
        %1081 = vmatpush.msra.mxu0 %v932
        %1082 = vmatpush.msra.mxu0 %v924
        %1083 = vmatpush.msra.mxu0 %v916
        %1084 = vmatmul.f32.gmra.mxu0 %v986
        %v1085 = vpop.f32.mrf.mxu0
        %v1086 = vadd.f32 0.0, %v1085
        %1087 = vdwg.mxu0
        %1088 = vmatpush.msra.mxu0 0.0
        %1089 = vmatpush.msra.mxu0 0.0
        %1090 = vmatpush.msra.mxu0 0.0
        %1091 = vmatpush.msra.mxu0 0.0
        %1092 = vmatpush.msra.mxu0 0.0
        %1093 = vmatpush.msra.mxu0 0.0
        %1094 = vmatpush.msra.mxu0 0.0
        %1095 = vmatpush.msra.mxu0 %v981
        %1096 = vmatpush.msra.mxu0 %v973
        %1097 = vmatpush.msra.mxu0 %v965
        %1098 = vmatpush.msra.mxu0 %v957
        %1099 = vmatpush.msra.mxu0 %v949
        %1100 = vmatpush.msra.mxu0 %v941
        %1101 = vmatpush.msra.mxu0 %v933
        %1102 = vmatpush.msra.mxu0 %v925
        %1103 = vmatpush.msra.mxu0 %v917
        %1104 = vmatmul.f32.gmra.mxu0 %v986
        %v1105 = vpop.f32.mrf.mxu0
        %v1106 = vadd.f32 0.0, %v1105
        %1107 = vdwg.mxu0
        %1108 = vmatpush.msra.mxu0 0.0
        %1109 = vmatpush.msra.mxu0 0.0
        %1110 = vmatpush.msra.mxu0 0.0
        %1111 = vmatpush.msra.mxu0 0.0
        %1112 = vmatpush.msra.mxu0 0.0
        %1113 = vmatpush.msra.mxu0 0.0
        %1114 = vmatpush.msra.mxu0 0.0
        %1115 = vmatpush.msra.mxu0 %v982
        %1116 = vmatpush.msra.mxu0 %v974
        %1117 = vmatpush.msra.mxu0 %v966
        %1118 = vmatpush.msra.mxu0 %v958
        %1119 = vmatpush.msra.mxu0 %v950
        %1120 = vmatpush.msra.mxu0 %v942
        %1121 = vmatpush.msra.mxu0 %v934
        %1122 = vmatpush.msra.mxu0 %v926
        %1123 = vmatpush.msra.mxu0 %v918
        %1124 = vmatmul.f32.gmra.mxu0 %v986
        %v1125 = vpop.f32.mrf.mxu0
        %v1126 = vadd.f32 0.0, %v1125
        %1127 = vdwg.mxu0
        %1128 = vmatpush.msra.mxu0 0.0
        %1129 = vmatpush.msra.mxu0 0.0
        %1130 = vmatpush.msra.mxu0 0.0
        %1131 = vmatpush.msra.mxu0 0.0
        %1132 = vmatpush.msra.mxu0 0.0
        %1133 = vmatpush.msra.mxu0 0.0
        %1134 = vmatpush.msra.mxu0 0.0
        %1135 = vmatpush.msra.mxu0 %v983
        %1136 = vmatpush.msra.mxu0 %v975
        %1137 = vmatpush.msra.mxu0 %v967
        %1138 = vmatpush.msra.mxu0 %v959
        %1139 = vmatpush.msra.mxu0 %v951
        %1140 = vmatpush.msra.mxu0 %v943
        %1141 = vmatpush.msra.mxu0 %v935
        %1142 = vmatpush.msra.mxu0 %v927
        %1143 = vmatpush.msra.mxu0 %v919
        %1144 = vmatmul.f32.gmra.mxu0 %v986
        %v1145 = vpop.f32.mrf.mxu0
        %v1146 = vadd.f32 0.0, %v1145
        %1147 = vdwg.mxu0
        %v1148 = vld [vmem:[%s3] sm:$0x3]
        %v1149 = vld [vmem:[%s303] sm:$0xff]
        %1151 = vset.pattern.permute.xlu0 0
        %1152 = vperm.xlu0 %1151, %v1149
        %v1153 = vpop.permute.xlu0 %1152
        %v1155 = vadd.f32 %v1006, %v1153
        %v1156 = vadd.f32 %v1026, %v1153
        %v1157 = vmax.f32 %v1155, 0.0
        %v1158 = vmax.f32 %v1156, 0.0
        %v1160 = vperm.slane %v1148, 0
        %v1161 = vperm.slane %v1148, 1
        %v1164 = vmul.f32 %v1157, %v1160
        %v1165 = vmul.f32 %v1158, %v1161
        %v1166 = vadd.f32 %v1164, %v1165
        %1167 = vadd.xlane.f32.xlu0 %v1166
        %v1168 = vpop.xlane.xlu0 %1167
        %1169 = vset.pattern.permute.xlu0 1
        %1170 = vperm.xlu0 %1169, %v1149
        %v1171 = vpop.permute.xlu0 %1170
        %v1173 = vadd.f32 %v1046, %v1171
        %v1174 = vadd.f32 %v1066, %v1171
        %v1175 = vmax.f32 %v1173, 0.0
        %v1176 = vmax.f32 %v1174, 0.0
        %v1177 = vmul.f32 %v1175, %v1160
        %v1178 = vmul.f32 %v1176, %v1161
        %v1179 = vadd.f32 %v1177, %v1178
        %1180 = vadd.xlane.f32.xlu0 %v1179
        %v1181 = vpop.xlane.xlu0 %1180
        %1182 = vset.pattern.permute.xlu0 2
        %1183 = vperm.xlu0 %1182, %v1149
        %v1184 = vpop.permute.xlu0 %1183
        %v1186 = vadd.f32 %v1086, %v1184
        %v1187 = vadd.f32 %v1106, %v1184
        %v1188 = vmax.f32 %v1186, 0.0
        %v1189 = vmax.f32 %v1187, 0.0
        %v1190 = vmul.f32 %v1188, %v1160
        %v1191 = vmul.f32 %v1189, %v1161
        %v1192 = vadd.f32 %v1190, %v1191
        %1193 = vadd.xlane.f32.xlu0 %v1192
        %v1194 = vpop.xlane.xlu0 %1193
        %1195 = vset.pattern.permute.xlu0 3
        %1196 = vperm.xlu0 %1195, %v1149
        %v1197 = vpop.permute.xlu0 %1196
        %v1199 = vadd.f32 %v1126, %v1197
        %v1200 = vadd.f32 %v1146, %v1197
        %v1201 = vmax.f32 %v1199, 0.0
        %v1202 = vmax.f32 %v1200, 0.0
        %v1203 = vmul.f32 %v1201, %v1160
        %v1204 = vmul.f32 %v1202, %v1161
        %v1205 = vadd.f32 %v1203, %v1204
        %1206 = vadd.xlane.f32.xlu0 %v1205
        %v1207 = vpop.xlane.xlu0 %1206
        %vm1208 = vcmask 7168
        %v1209 = vsel %vm1208, %v1168, %v1181
        %vm1210 = vcmask 15360
        %v1211 = vsel %vm1210, %v1209, %v1194
        %vm1212 = vcmask 23552
        %v1213 = vsel %vm1212, %v1211, %v1207
        %1214 = vxpose.xlu0.b32.start [1/16] %v1213, 128
        %1215 = vxpose.xlu0.b32.cont [2/16] 0.0, 128
        %1216 = vxpose.xlu0.b32.cont [3/16] 0.0, 128
        %1217 = vxpose.xlu0.b32.cont [4/16] 0.0, 128
        %1218 = vxpose.xlu0.b32.cont [5/16] 0.0, 128
        %1219 = vxpose.xlu0.b32.cont [6/16] 0.0, 128
        %1220 = vxpose.xlu0.b32.cont [7/16] 0.0, 128
        %1221 = vxpose.xlu0.b32.cont [8/16] 0.0, 128
        %1222 = vxpose.xlu0.b32.cont [9/16] 0.0, 128
        %1223 = vxpose.xlu0.b32.cont [10/16] 0.0, 128
        %1224 = vxpose.xlu0.b32.cont [11/16] 0.0, 128
        %1225 = vxpose.xlu0.b32.cont [12/16] 0.0, 128
        %1226 = vxpose.xlu0.b32.cont [13/16] 0.0, 128
        %1227 = vxpose.xlu0.b32.cont [14/16] 0.0, 128
        %1228 = vxpose.xlu0.b32.cont [15/16] 0.0, 128
        %1229 = vxpose.xlu0.b32.end [16/16] 0.0, 128
        %v1230 = vpop.trf.xlu0
        %v1231 = vpop.trf.xlu0
        %v1232 = vpop.trf.xlu0
        %v1233 = vpop.trf.xlu0
        %v1234 = vpop.trf.xlu0
        %v1235 = vpop.trf.xlu0
        %v1236 = vpop.trf.xlu0
        %v1237 = vpop.trf.xlu0
        %v1238 = vpop.trf.xlu0
        %v1239 = vpop.trf.xlu0
        %v1240 = vpop.trf.xlu0
        %v1241 = vpop.trf.xlu0
        %v1242 = vpop.trf.xlu0
        %v1243 = vpop.trf.xlu0
        %v1244 = vpop.trf.xlu0
        %v1245 = vpop.trf.xlu0
        %v1246 = vld [vmem:[%s4] sm:$0xff]
        %v1247 = vld [vmem:[%s307] sm:$0xf]
        %vm1248 = vcmask 64512
        %v1250 = vsel %vm1248, %v1230, 0
        %1252 = vmatpush.msra.mxu0 0.0
        %1253 = vmatpush.msra.mxu0 0.0
        %1254 = vmatpush.msra.mxu0 0.0
        %1255 = vmatpush.msra.mxu0 0.0
        %1256 = vmatpush.msra.mxu0 0.0
        %1257 = vmatpush.msra.mxu0 0.0
        %1258 = vmatpush.msra.mxu0 0.0
        %1259 = vmatpush.msra.mxu0 0.0
        %1260 = vmatpush.msra.mxu0 0.0
        %1261 = vmatpush.msra.mxu0 0.0
        %1262 = vmatpush.msra.mxu0 0.0
        %1263 = vmatpush.msra.mxu0 0.0
        %1264 = vmatpush.msra.mxu0 0.0
        %1265 = vmatpush.msra.mxu0 0.0
        %1266 = vmatpush.msra.mxu0 0.0
        %1267 = vmatpush.msra.mxu0 %v1246
        %1268 = vmatmul.f32.gmra.mxu0 %v1250
        %v1269 = vpop.f32.mrf.mxu0
        %v1270 = vadd.f32 %v1247, %v1269
        %1271 = vdwg.mxu0
        %1272 = vst [vmem:[%s298] sm:$0xf] %v1270
        %s1273 = sand.u32 %s172, 1
        %s1274 = scalar_lea.sflag [#allocation5], %s1273
        %s1275 = sand.u32 %s172, 1
        %s1276 = smul.addr %s1275, 4
        %s1277 = scalar_lea.vmem [#allocation6], %s1276
        // Predicated region
        $region49: #{tpu_custom_call.1} parent=43 // pred_check
          %p1278 = pneg %p182
        $region50: #{tpu_custom_call.1} parent=43 // pred_check_branch
          %1280 = sbr.rel (%p1278) target = $region52
        $region51: #{tpu_custom_call.1} parent=43 // pred_region
          %1282 = vsyncadd %s1274, 0
          %s1283 = smul.addr %s23, 4
          %s1284 = scalar_lea.hbm %s6, %s1283
          %s1286 = sshll.u32 %s1277, 4
          %s1287 = int_to_ptr.vmem [resolvable:$true] %s1286
          %s1288 = sshll.u32 %s1284, 4
          %s1289 = int_to_ptr.hbm [resolvable:$true] %s1288
          %1291 = dma.vmem_to_hbm [thread:$0]  %s1287, 64, %s1289, %s1274
        $region52: #{tpu_custom_call.1} parent=43 // pred_fallthru
          _
      $region44: #{tpu_custom_call.1} parent=5 // pred_fallthru
        _
      %p1292 = scmp.le.s32.totalorder 2, %s18
      // Predicated region
      $region53: #{tpu_custom_call.1} parent=5 // pred_check
        %p1293 = pneg %p1292
      $region54: #{tpu_custom_call.1} parent=5 // pred_check_branch
        %1295 = sbr.rel (%p1293) target = $region56
      $region55: #{tpu_custom_call.1} parent=5 // pred_region
        %s1296 = ssub.s32 %s18, 2
        // Predicated region
        $region57: #{tpu_custom_call.1} parent=55 // pred_check
          %p1297 = pneg %p188
        $region58: #{tpu_custom_call.1} parent=55 // pred_check_branch
          %1299 = sbr.rel (%p1297) target = $region60
        $region59: #{tpu_custom_call.1} parent=55 // pred_region
          %s1300 = sand.u32 %s173, 1
          %s1301 = scalar_lea.sflag [#allocation5], %s1300
          %s1302 = sand.u32 %s173, 1
          %s1303 = smul.addr %s1302, 4
          %s1304 = scalar_lea.vmem [#allocation6], %s1303
          %1306 = dma.done %s1301, 64
        $region60: #{tpu_custom_call.1} parent=55 // pred_fallthru
          _
      $region56: #{tpu_custom_call.1} parent=5 // pred_fallthru
        _
    $region6: #{tpu_custom_call.1} parent=1 // loop_footer
      %s22 = sadd.s32 1, %s18
    $region7: #{tpu_custom_call.1} parent=1 // loop_footer_branch
      %17 = sbr.rel target = $region3
    $region8: #{tpu_custom_call.1} parent=1 // loop_exit
      _
    %1307 = vsyncpa [#allocation4], 1
    %s1308 = scalar_lea.sflag [#allocation4], 1
    %1309 = vsyncpa %s1308, 1
    %1310 = vsyncpa [#allocation5], 1
    %s1311 = scalar_lea.sflag [#allocation5], 1
    %1312 = vsyncpa %s1311, 1

</llo_original>
